<compile_context>
chip_gen: v6e
topology: v6e:2x2x1
jax: 0.10.0
libtpu: 0.0.40
codegen_flags: <defaults>
</compile_context>

<pallas_src>
import jax
import jax.numpy as jnp
import numpy as np
from jax.experimental import pallas as pl
from jax.experimental.pallas import tpu as pltpu


def attention_kernel(h_ref, att_ref, patt_ref,
                     w_h2att_ref, b_h2att_ref, w_alpha_ref, b_alpha_ref,
                     out_ref):
    # Elementwise compute dtype follows the streamed feature dtype (bf16 when
    # the caller provides bf16 features; f32 otherwise, e.g. on v5e).
    cdt = patt_ref.dtype

    # h2att: (TB, H) @ (H, H) on the MXU, f32 accumulation.
    att_h = (jnp.dot(h_ref[...], w_h2att_ref[...],
                     preferred_element_type=jnp.float32)
             + b_h2att_ref[...].astype(jnp.float32))                  # (TB, H) f32

    # dot = tanh(p_att_feats + att_h) -- elementwise in the feature dtype so
    # the dominant (TB, A, H) temporaries never materialize in f32.
    dot = jnp.tanh(patt_ref[...] + att_h[:, None, :].astype(cdt))     # (TB, A, H)

    # alpha_net: multiply in cdt, lane-reduce (XLU) with an f32 accumulator.
    # TODO(synk): on v7x, if the bundle dump shows VALU/XLU saturating, move
    # this reduction onto the MXU ((TB*A, H) @ w_alpha padded to (H, 128)).
    score = (jnp.sum(dot * w_alpha_ref[...][None, :, :].astype(cdt),
                     axis=-1, dtype=jnp.float32)
             + b_alpha_ref[0, 0])                                      # (TB, A) f32

    # Softmax over attention positions (f32); reciprocal on the idle EUP slot.
    m = jnp.max(score, axis=-1, keepdims=True)
    e = jnp.exp(score - m)
    denom = jnp.sum(e, axis=-1, keepdims=True)
    weight = e * pl.reciprocal(denom, approx=True)                     # (TB, A) f32

    # att_res = sum_a weight[b, a] * att_feats[b, a, :]
    # multiply in the feature dtype, sublane-reduce with an f32 accumulator.
    att_res = jnp.sum(weight.astype(att_ref.dtype)[:, :, None] * att_ref[...],
                      axis=1, dtype=jnp.float32)                       # (TB, H) f32

    out_ref[...] = att_res.astype(out_ref.dtype)


def _round_up(x, m):
    return -(-x // m) * m


def attention(h, att_feats, p_att_feats, params, *, block_b=None):
    """Pallas forward pass. Weights are passed pre-transposed:
       w_h2att: (H, H) == nn.Linear(H, H).weight.T
       b_h2att: (1, H)
       w_alpha: (1, H) == nn.Linear(H, 1).weight
       b_alpha: (1, 1)
    Features (att_feats / p_att_feats) are streamed in the dtype they arrive
    in -- pass bf16 features on v6e/v7x for half the HBM traffic and bf16
    VPU/EUP elementwise math; reductions always accumulate in f32.
    """
    B, H = h.shape
    att_size = att_feats.size // (B * H)
    att_feats = att_feats.reshape(B, att_size, H)
    p_att_feats = p_att_feats.reshape(B, att_size, H)
    feat_bytes = att_feats.dtype.itemsize

    # Per-generation VMEM budget (v5e/v6e: 128 MiB, v7x: 64 MiB per TC).
    try:
        vmem_cap = int(pltpu.get_tpu_info().vmem_capacity_bytes)
    except Exception:
        vmem_cap = 64 * 1024 * 1024            # conservative fallback (v7x)
    if vmem_cap <= 0:
        vmem_cap = 64 * 1024 * 1024
    vmem_limit = min((vmem_cap * 3) // 4, 100 * 1024 * 1024)

    if block_b is None:
        # Per batch row: att+patt double-buffered (2 tensors x 2 buffers) plus
        # ~3 tile-sized in-kernel temporaries, all in the feature dtype.
        per_row = 8 * att_size * H * feat_bytes + 8 * H * 4
        align = 16 if feat_bytes < 4 else 8     # full sublane pack per vreg
        tb = (vmem_limit * 6 // 10) // max(per_row, 1)
        tb = max(align, min(512, (tb // align) * align))
        # TODO(synk): on v7x, also prefer an even number of grid steps so the
        # single "parallel" batch axis splits evenly across both TensorCores.
        block_b = min(tb, _round_up(B, align))

    grid = (pl.cdiv(B, block_b),)   # remainder handled by a clipped last tile
    const2 = lambda i: (0, 0)       # weights stay VMEM-resident across steps

    # TODO(synk): if this runs once per decode step at tiny B, keep the
    # weights resident across calls (cross-pallas_call prefetch) instead of
    # re-DMAing them every launch.
    out = pl.pallas_call(
        attention_kernel,
        out_shape=jax.ShapeDtypeStruct((B, H), h.dtype),
        grid=grid,
        in_specs=[
            pl.BlockSpec((block_b, H), lambda i: (i, 0)),
            pl.BlockSpec((block_b, att_size, H), lambda i: (i, 0, 0)),
            pl.BlockSpec((block_b, att_size, H), lambda i: (i, 0, 0)),
            pl.BlockSpec((H, H), const2),
            pl.BlockSpec((1, H), const2),
            pl.BlockSpec((1, H), const2),
            pl.BlockSpec(memory_space=pltpu.MemorySpace.SMEM),
        ],
        out_specs=pl.BlockSpec((block_b, H), lambda i: (i, 0)),
        compiler_params=pltpu.CompilerParams(
            dimension_semantics=("parallel",),
            vmem_limit_bytes=int(vmem_limit)),
    )(h, att_feats, p_att_feats,
      params["w_h2att"], params["b_h2att"], params["w_alpha"],
      params["b_alpha"])
    return out


def attention_reference(h, att_feats, p_att_feats, params):
    """Pure-JAX f32 reference mirroring the PyTorch forward."""
    B, H = h.shape
    att_size = att_feats.size // (B * H)
    att = att_feats.reshape(B, att_size, H).astype(jnp.float32)
    patt = p_att_feats.reshape(B, att_size, H).astype(jnp.float32)

    att_h = (jnp.dot(h.astype(jnp.float32), params["w_h2att"],
                     preferred_element_type=jnp.float32)
             + params["b_h2att"])
    dot = jnp.tanh(patt + att_h[:, None, :])
    score = (jnp.sum(dot * params["w_alpha"][None, :, :], axis=-1)
             + params["b_alpha"][0, 0])
    weight = jax.nn.softmax(score, axis=-1)
    return jnp.einsum("ba,bah->bh", weight, att).astype(h.dtype)


def init_params(key, H):
    ks = jax.random.split(key, 4)
    s = 0.1
    return {
        "w_h2att": jax.random.normal(ks[0], (H, H), jnp.float32) * s,
        "b_h2att": jax.random.normal(ks[1], (1, H), jnp.float32) * s,
        "w_alpha": jax.random.normal(ks[2], (1, H), jnp.float32) * s,
        "b_alpha": jax.random.normal(ks[3], (1, 1), jnp.float32) * s,
    }


if __name__ == "__main__":
    B, A, H = 16, 16, 128   # batch, att_size, hidden_size (rnn_size)

    key = jax.random.PRNGKey(0)
    k0, k1, k2, kp = jax.random.split(key, 4)
    h = jax.random.normal(k0, (B, H), jnp.float32)
    att_feats = jax.random.normal(k1, (B, A, H), jnp.float32)
    p_att_feats = jax.random.normal(k2, (B, A, H), jnp.float32)
    params = init_params(kp, H)

    out = attention(h, att_feats, p_att_feats, params)
    out = jax.block_until_ready(out)

    ref = attention_reference(h, att_feats, p_att_feats, params)
    np.testing.assert_allclose(np.asarray(out), np.asarray(ref),
                               rtol=1e-2, atol=1e-2)

    print("KERNEL_OK")
</pallas_src>

<mosaic_0001>
module attributes {stable_mosaic.version = 11 : i64} {
  func.func @attention_kernel(%arg0: i32, %arg1: memref<16x128xf32, #tpu.memory_space<vmem>>, %arg2: memref<16x16x128xf32, #tpu.memory_space<vmem>>, %arg3: memref<16x16x128xf32, #tpu.memory_space<vmem>>, %arg4: memref<128x128xf32, #tpu.memory_space<vmem>>, %arg5: memref<1x128xf32, #tpu.memory_space<vmem>>, %arg6: memref<1x128xf32, #tpu.memory_space<vmem>>, %arg7: memref<1x1xf32, #tpu.memory_space<smem>>, %arg8: memref<16x128xf32, #tpu.memory_space<vmem>>) attributes {dimension_semantics = [#tpu.dimension_semantics<parallel>], iteration_bounds = array<i64: 1>, scalar_prefetch = 0 : i64, scratch_operands = 0 : i64, tpu.core_type = #tpu.core_type<tc>, window_params = [{transform_indices = @transform_0, window_bounds = array<i64: 16, 128>}, {transform_indices = @transform_1, window_bounds = array<i64: 16, 16, 128>}, {transform_indices = @transform_2, window_bounds = array<i64: 16, 16, 128>}, {pipeline_mode = #tpu.pipeline_mode<synchronous>, transform_indices = @transform_3, window_bounds = array<i64: 128, 128>}, {pipeline_mode = #tpu.pipeline_mode<synchronous>, transform_indices = @transform_4, window_bounds = array<i64: 1, 128>}, {pipeline_mode = #tpu.pipeline_mode<synchronous>, transform_indices = @transform_5, window_bounds = array<i64: 1, 128>}, {transform_indices = @transform_6, window_bounds = array<i64: 1, 1>}, {transform_indices = @transform_7, window_bounds = array<i64: 16, 128>}]} {
    %c0 = arith.constant 0 : index
    %c0_0 = arith.constant 0 : index
    %0 = vector.load %arg1[%c0, %c0_0] : memref<16x128xf32, #tpu.memory_space<vmem>>, vector<16x128xf32>
    %c0_1 = arith.constant 0 : index
    %c0_2 = arith.constant 0 : index
    %1 = vector.load %arg4[%c0_1, %c0_2] : memref<128x128xf32, #tpu.memory_space<vmem>>, vector<128x128xf32>
    %cst = arith.constant dense<0.000000e+00> : vector<16x128xf32>
    %2 = tpu.matmul %0, %1, %cst {dimension_numbers = #tpu.dot_dimension_numbers<[1], [0], [0], [1], [0, 0, 1, 1], [], []>} : vector<16x128xf32>, vector<128x128xf32>, vector<16x128xf32> -> vector<16x128xf32>
    %c0_3 = arith.constant 0 : index
    %c0_4 = arith.constant 0 : index
    %3 = vector.load %arg5[%c0_3, %c0_4] : memref<1x128xf32, #tpu.memory_space<vmem>>, vector<1x128xf32>
    %4 = vector.broadcast %3 : vector<1x128xf32> to vector<16x128xf32>
    %5 = arith.addf %2, %4 : vector<16x128xf32>
    %c0_5 = arith.constant 0 : index
    %c0_6 = arith.constant 0 : index
    %c0_7 = arith.constant 0 : index
    %6 = vector.load %arg3[%c0_5, %c0_6, %c0_7] : memref<16x16x128xf32, #tpu.memory_space<vmem>>, vector<16x16x128xf32>
    %7 = vector.shape_cast %5 : vector<16x128xf32> to vector<16x1x128xf32>
    %8 = vector.broadcast %7 : vector<16x1x128xf32> to vector<16x16x128xf32>
    %9 = arith.addf %6, %8 : vector<16x16x128xf32>
    %10 = math.tanh %9 : vector<16x16x128xf32>
    %c0_8 = arith.constant 0 : index
    %c0_9 = arith.constant 0 : index
    %11 = vector.load %arg6[%c0_8, %c0_9] : memref<1x128xf32, #tpu.memory_space<vmem>>, vector<1x128xf32>
    %12 = vector.shape_cast %11 : vector<1x128xf32> to vector<1x1x128xf32>
    %13 = vector.broadcast %12 : vector<1x1x128xf32> to vector<16x16x128xf32>
    %14 = arith.mulf %10, %13 : vector<16x16x128xf32>
    %cst_10 = arith.constant dense<0.000000e+00> : vector<16x16xf32>
    %15 = vector.multi_reduction <add>, %14, %cst_10 [2] : vector<16x16x128xf32> to vector<16x16xf32>
    %c0_11 = arith.constant 0 : index
    %c0_12 = arith.constant 0 : index
    %16 = memref.load %arg7[%c0_11, %c0_12] : memref<1x1xf32, #tpu.memory_space<smem>>
    %17 = vector.broadcast %16 : f32 to vector<16x16xf32>
    %18 = arith.addf %15, %17 : vector<16x16xf32>
    %cst_13 = arith.constant dense<0xFF800000> : vector<16xf32>
    %19 = vector.multi_reduction <maximumf>, %18, %cst_13 [1] : vector<16x16xf32> to vector<16xf32>
    %20 = vector.shape_cast %19 : vector<16xf32> to vector<16x1xf32>
    %21 = vector.broadcast %20 : vector<16x1xf32> to vector<16x16xf32>
    %22 = arith.subf %18, %21 : vector<16x16xf32>
    %23 = math.exp %22 : vector<16x16xf32>
    %cst_14 = arith.constant dense<0.000000e+00> : vector<16xf32>
    %24 = vector.multi_reduction <add>, %23, %cst_14 [1] : vector<16x16xf32> to vector<16xf32>
    %25 = vector.shape_cast %24 : vector<16xf32> to vector<16x1xf32>
    %26 = tpu.reciprocal %25 {approx = true} : vector<16x1xf32> -> vector<16x1xf32>
    %27 = vector.broadcast %26 : vector<16x1xf32> to vector<16x16xf32>
    %28 = arith.mulf %23, %27 : vector<16x16xf32>
    %29 = vector.shape_cast %28 : vector<16x16xf32> to vector<16x16x1xf32>
    %c0_15 = arith.constant 0 : index
    %c0_16 = arith.constant 0 : index
    %c0_17 = arith.constant 0 : index
    %30 = vector.load %arg2[%c0_15, %c0_16, %c0_17] : memref<16x16x128xf32, #tpu.memory_space<vmem>>, vector<16x16x128xf32>
    %31 = vector.broadcast %29 : vector<16x16x1xf32> to vector<16x16x128xf32>
    %32 = arith.mulf %31, %30 : vector<16x16x128xf32>
    %cst_18 = arith.constant dense<0.000000e+00> : vector<16x128xf32>
    %33 = vector.multi_reduction <add>, %32, %cst_18 [1] : vector<16x16x128xf32> to vector<16x128xf32>
    %c0_19 = arith.constant 0 : index
    %c0_20 = arith.constant 0 : index
    %34 = vector.load %arg8[%c0_19, %c0_20] : memref<16x128xf32, #tpu.memory_space<vmem>>, vector<16x128xf32>
    tpu.vector_store %arg8[%c0_19, %c0_20], %33 {strides = array<i32>} : memref<16x128xf32, #tpu.memory_space<vmem>>, vector<16x128xf32>,
    return
  }
  func.func @transform_0(%arg0: i32) -> (i32, i32) {
    %c0_i32 = arith.constant 0 : i32
    %c0_i32_0 = arith.constant 0 : i32
    return %arg0, %c0_i32 : i32, i32
  }
  func.func @transform_1(%arg0: i32) -> (i32, i32, i32) {
    %c0_i32 = arith.constant 0 : i32
    %c0_i32_0 = arith.constant 0 : i32
    %c0_i32_1 = arith.constant 0 : i32
    return %arg0, %c0_i32, %c0_i32_0 : i32, i32, i32
  }
  func.func @transform_2(%arg0: i32) -> (i32, i32, i32) {
    %c0_i32 = arith.constant 0 : i32
    %c0_i32_0 = arith.constant 0 : i32
    %c0_i32_1 = arith.constant 0 : i32
    return %arg0, %c0_i32, %c0_i32_0 : i32, i32, i32
  }
  func.func @transform_3(%arg0: i32) -> (i32, i32) {
    %c0_i32 = arith.constant 0 : i32
    %c0_i32_0 = arith.constant 0 : i32
    %c0_i32_1 = arith.constant 0 : i32
    return %c0_i32, %c0_i32_0 : i32, i32
  }
  func.func @transform_4(%arg0: i32) -> (i32, i32) {
    %c0_i32 = arith.constant 0 : i32
    %c0_i32_0 = arith.constant 0 : i32
    %c0_i32_1 = arith.constant 0 : i32
    return %c0_i32, %c0_i32_0 : i32, i32
  }
  func.func @transform_5(%arg0: i32) -> (i32, i32) {
    %c0_i32 = arith.constant 0 : i32
    %c0_i32_0 = arith.constant 0 : i32
    %c0_i32_1 = arith.constant 0 : i32
    return %c0_i32, %c0_i32_0 : i32, i32
  }
  func.func @transform_6(%arg0: i32) -> (i32, i32) {
    %c0_i32 = arith.constant 0 : i32
    %c0_i32_0 = arith.constant 0 : i32
    %c0_i32_1 = arith.constant 0 : i32
    return %c0_i32, %c0_i32_0 : i32, i32
  }
  func.func @transform_7(%arg0: i32) -> (i32, i32) {
    %c0_i32 = arith.constant 0 : i32
    %c0_i32_0 = arith.constant 0 : i32
    return %arg0, %c0_i32 : i32, i32
  }
}

</mosaic_0001>

<llo_original>
// kernel: tpu_custom_call.1
$region0: #{tpu_custom_call.1}
  #allocation0 [shape = 'u32[]', space=smem, size = 0x4, offset = 0x4, fixed_abs, tag = 'smem constant byte address 0x4 - core index']
  #allocation1 [shape = 'u32[144,128]{1,0:T(1,128)}', space=vmem, size = 0x12000, scoped, tag = 'internal scratch']
  #allocation2 [shape = 'f32[1,1]{1,0:T(1,128)S(6)}', space=smem, size = 0x200, scoped, tag = 'scoped memory for tpu_custom_call.1']
  %s0 = inlined_call_operand.hbm [shape: f32[16,128], index: 0, kind: input, shape index: {}]
  %s1 = inlined_call_operand.hbm [shape: f32[16,16,128], index: 1, kind: input, shape index: {}]
  %s2 = inlined_call_operand.hbm [shape: f32[16,16,128], index: 2, kind: input, shape index: {}]
  %s3 = inlined_call_operand.hbm [shape: f32[128,128], index: 3, kind: input, shape index: {}]
  %s4 = inlined_call_operand.vmem [shape: f32[1,128], index: 4, kind: input, shape index: {}]
  %s5 = inlined_call_operand.vmem [shape: f32[1,128], index: 5, kind: input, shape index: {}]
  %s6 = inlined_call_operand.<no memory space> [shape: f32[1,1], index: 6, kind: input, shape index: {}]
  %s7 = inlined_call_operand.hbm [shape: f32[16,128], index: 7, kind: output, shape index: {}]
  %s8 = sld [smem:[#allocation0]]
  $region54: #{tpu_custom_call.1} parent=0
    _
  %s10 = ssub.s32 1, %s8
  %s11 = scalar_select 0, %s10, %s8
  %12 = sst [smem:[#allocation2]] %s6
  $region1: #{tpu_custom_call.1} parent=0
    #allocation3 [shape = 'u8[8192]{0}', space=vmem, size = 0x2000, scoped, tag = 'input window, operand 0, single buffered']
    #allocation4 [shape = 's32[1]{0}', space=sflag, size = 0x4, scoped, tag = 'scoped memory for tpu_custom_call.1']
    #allocation5 [shape = 's32[1]{0}', space=sflag, size = 0x4, scoped, tag = 'scoped memory for tpu_custom_call.1']
    #allocation6 [shape = 'u8[131072]{0}', space=vmem, size = 0x20000, scoped, tag = 'input window, operand 1, single buffered']
    #allocation7 [shape = 's32[1]{0}', space=sflag, size = 0x4, scoped, tag = 'scoped memory for tpu_custom_call.1']
    #allocation8 [shape = 'u8[131072]{0}', space=vmem, size = 0x20000, scoped, tag = 'input window, operand 2, single buffered']
    #allocation9 [shape = 'u8[65536]{0}', space=vmem, size = 0x10000, scoped, tag = 'input window, operand 3, single buffered']
    #allocation10 [shape = 's32[1]{0}', space=sflag, size = 0x4, scoped, tag = 'scoped memory for tpu_custom_call.1']
    #allocation11 [shape = 'u8[8192]{0}', space=vmem, size = 0x2000, scoped, tag = 'output window, operand 0, single buffered']
    %13 = vsyncpa [#allocation4], 0
    %14 = vsyncpa [#allocation7], 0
    %15 = vsyncpa [#allocation10], 0
    %16 = vsyncpa [#allocation5], 0
    // Predicated region
    $region2: #{tpu_custom_call.1} parent=1 // pred_check
      _
    $region3: #{tpu_custom_call.1} parent=1 // pred_check_branch
      %18 = sbr.rel (0) target = $region5
    $region4: #{tpu_custom_call.1} parent=1 // pred_region
      %s20 = ssub.s32 256, 256
      %21 = vsyncadd [#allocation4], %s20
      %s22 = sshll.u32 [#allocation3], 4
      %s23 = int_to_ptr.vmem [resolvable:$true] %s22
      %28 = dma.hbm_to_vmem [thread:$0]  %s0, 256, %s23, [#allocation4], 128, 128, 8
    $region5: #{tpu_custom_call.1} parent=1 // pred_fallthru
      _
    // Predicated region
    $region6: #{tpu_custom_call.1} parent=1 // pred_check
      _
    $region7: #{tpu_custom_call.1} parent=1 // pred_check_branch
      %30 = sbr.rel (0) target = $region9
    $region8: #{tpu_custom_call.1} parent=1 // pred_region
      %s32 = ssub.s32 4096, 4096
      %33 = vsyncadd [#allocation7], %s32
      %s34 = sshll.u32 [#allocation6], 4
      %s35 = int_to_ptr.vmem [resolvable:$true] %s34
      %40 = dma.hbm_to_vmem [thread:$0]  %s1, 4096, %s35, [#allocation7], 128, 128, 8
    $region9: #{tpu_custom_call.1} parent=1 // pred_fallthru
      _
    // Predicated region
    $region10: #{tpu_custom_call.1} parent=1 // pred_check
      _
    $region11: #{tpu_custom_call.1} parent=1 // pred_check_branch
      %42 = sbr.rel (0) target = $region13
    $region12: #{tpu_custom_call.1} parent=1 // pred_region
      %s44 = ssub.s32 4096, 4096
      %45 = vsyncadd [#allocation7], %s44
      %s46 = sshll.u32 [#allocation8], 4
      %s47 = int_to_ptr.vmem [resolvable:$true] %s46
      %52 = dma.hbm_to_vmem [thread:$0]  %s2, 4096, %s47, [#allocation7], 128, 128, 8
    $region13: #{tpu_custom_call.1} parent=1 // pred_fallthru
      _
    // Predicated region
    $region14: #{tpu_custom_call.1} parent=1 // pred_check
      _
    $region15: #{tpu_custom_call.1} parent=1 // pred_check_branch
      %54 = sbr.rel (0) target = $region17
    $region16: #{tpu_custom_call.1} parent=1 // pred_region
      %s56 = ssub.s32 2048, 2048
      %57 = vsyncadd [#allocation10], %s56
      %s58 = sshll.u32 [#allocation9], 4
      %s59 = int_to_ptr.vmem [resolvable:$true] %s58
      %64 = dma.hbm_to_vmem [thread:$0]  %s3, 2048, %s59, [#allocation10], 128, 128, 8
    $region17: #{tpu_custom_call.1} parent=1 // pred_fallthru
      _
    // Predicated region
    $region18: #{tpu_custom_call.1} parent=1 // pred_check
      _
    $region19: #{tpu_custom_call.1} parent=1 // pred_check_branch
      %66 = sbr.rel (0) target = $region21
    $region20: #{tpu_custom_call.1} parent=1 // pred_region
      _
    $region21: #{tpu_custom_call.1} parent=1 // pred_fallthru
      _
    // Predicated region
    $region22: #{tpu_custom_call.1} parent=1 // pred_check
      _
    $region23: #{tpu_custom_call.1} parent=1 // pred_check_branch
      %68 = sbr.rel (0) target = $region25
    $region24: #{tpu_custom_call.1} parent=1 // pred_region
      _
    $region25: #{tpu_custom_call.1} parent=1 // pred_fallthru
      _
    // Predicated region
    $region26: #{tpu_custom_call.1} parent=1 // pred_check
      _
    $region27: #{tpu_custom_call.1} parent=1 // pred_check_branch
      %70 = sbr.rel (0) target = $region29
    $region28: #{tpu_custom_call.1} parent=1 // pred_region
      _
    $region29: #{tpu_custom_call.1} parent=1 // pred_fallthru
      _
    // Predicated region
    $region30: #{tpu_custom_call.1} parent=1 // pred_check
      _
    $region31: #{tpu_custom_call.1} parent=1 // pred_check_branch
      %72 = sbr.rel (0) target = $region33
    $region32: #{tpu_custom_call.1} parent=1 // pred_region
      %73 = dma.done [#allocation4], 256
    $region33: #{tpu_custom_call.1} parent=1 // pred_fallthru
      _
    // Predicated region
    $region34: #{tpu_custom_call.1} parent=1 // pred_check
      _
    $region35: #{tpu_custom_call.1} parent=1 // pred_check_branch
      %75 = sbr.rel (0) target = $region37
    $region36: #{tpu_custom_call.1} parent=1 // pred_region
      %76 = dma.done [#allocation7], 4096
    $region37: #{tpu_custom_call.1} parent=1 // pred_fallthru
      _
    // Predicated region
    $region38: #{tpu_custom_call.1} parent=1 // pred_check
      _
    $region39: #{tpu_custom_call.1} parent=1 // pred_check_branch
      %78 = sbr.rel (0) target = $region41
    $region40: #{tpu_custom_call.1} parent=1 // pred_region
      %79 = dma.done [#allocation7], 4096
    $region41: #{tpu_custom_call.1} parent=1 // pred_fallthru
      _
    // Predicated region
    $region42: #{tpu_custom_call.1} parent=1 // pred_check
      _
    $region43: #{tpu_custom_call.1} parent=1 // pred_check_branch
      %81 = sbr.rel (0) target = $region45
    $region44: #{tpu_custom_call.1} parent=1 // pred_region
      %82 = dma.done [#allocation10], 2048
    $region45: #{tpu_custom_call.1} parent=1 // pred_fallthru
      _
    %v83 = vld [vmem:[#allocation3] sm:$0xff]
    %v84 = vld [vmem:[#allocation3 + $0x8] sm:$0xff]
    %v85 = vld [vmem:[#allocation9] sm:$0xff]
    %v86 = vld [vmem:[#allocation9 + $0x8] sm:$0xff]
    %v87 = vld [vmem:[#allocation9 + $0x10] sm:$0xff]
    %v88 = vld [vmem:[#allocation9 + $0x18] sm:$0xff]
    %v89 = vld [vmem:[#allocation9 + $0x20] sm:$0xff]
    %v90 = vld [vmem:[#allocation9 + $0x28] sm:$0xff]
    %v91 = vld [vmem:[#allocation9 + $0x30] sm:$0xff]
    %v92 = vld [vmem:[#allocation9 + $0x38] sm:$0xff]
    %v93 = vld [vmem:[#allocation9 + $0x40] sm:$0xff]
    %v94 = vld [vmem:[#allocation9 + $0x48] sm:$0xff]
    %v95 = vld [vmem:[#allocation9 + $0x50] sm:$0xff]
    %v96 = vld [vmem:[#allocation9 + $0x58] sm:$0xff]
    %v97 = vld [vmem:[#allocation9 + $0x60] sm:$0xff]
    %v98 = vld [vmem:[#allocation9 + $0x68] sm:$0xff]
    %v99 = vld [vmem:[#allocation9 + $0x70] sm:$0xff]
    %v100 = vld [vmem:[#allocation9 + $0x78] sm:$0xff]
    %v101 = vld [vmem:[%s4] sm:$0x1]
    %v103 = vlaneseq
    %v104 = vshrl.u32 %v103, 7
    %v105 = vsub.s32 0, %v104
    %v106 = vrot.slane %v101, %v105
    %108 = vmatprep.subr.mxu0 0.0
    %109 = vmatpush1.msra.mxu0 %v100
    %110 = vmatprep.subr.mxu0 0.0
    %111 = vmatpush1.msra.mxu0 %v99
    %112 = vmatprep.subr.mxu0 0.0
    %113 = vmatpush1.msra.mxu0 %v98
    %114 = vmatprep.subr.mxu0 0.0
    %115 = vmatpush1.msra.mxu0 %v97
    %116 = vmatprep.subr.mxu0 0.0
    %117 = vmatpush1.msra.mxu0 %v96
    %118 = vmatprep.subr.mxu0 0.0
    %119 = vmatpush1.msra.mxu0 %v95
    %120 = vmatprep.subr.mxu0 0.0
    %121 = vmatpush1.msra.mxu0 %v94
    %122 = vmatprep.subr.mxu0 0.0
    %123 = vmatpush1.msra.mxu0 %v93
    %124 = vmatprep.subr.mxu0 0.0
    %125 = vmatpush1.msra.mxu0 %v92
    %126 = vmatprep.subr.mxu0 0.0
    %127 = vmatpush1.msra.mxu0 %v91
    %128 = vmatprep.subr.mxu0 0.0
    %129 = vmatpush1.msra.mxu0 %v90
    %130 = vmatprep.subr.mxu0 0.0
    %131 = vmatpush1.msra.mxu0 %v89
    %132 = vmatprep.subr.mxu0 0.0
    %133 = vmatpush1.msra.mxu0 %v88
    %134 = vmatprep.subr.mxu0 0.0
    %135 = vmatpush1.msra.mxu0 %v87
    %136 = vmatprep.subr.mxu0 0.0
    %137 = vmatpush1.msra.mxu0 %v86
    %138 = vmatprep.subr.mxu0 0.0
    %139 = vmatpush1.msra.mxu0 %v85
    %140 = vmatprep.subr.mxu0 0.0
    %141 = vmatpush2.msra.mxu0 0.0
    %142 = vmatprep.subr.mxu0 0.0
    %143 = vmatpush2.msra.mxu0 0.0
    %144 = vmatprep.subr.mxu0 0.0
    %145 = vmatpush2.msra.mxu0 0.0
    %146 = vmatprep.subr.mxu0 0.0
    %147 = vmatpush2.msra.mxu0 0.0
    %148 = vmatprep.subr.mxu0 0.0
    %149 = vmatpush2.msra.mxu0 0.0
    %150 = vmatprep.subr.mxu0 0.0
    %151 = vmatpush2.msra.mxu0 0.0
    %152 = vmatprep.subr.mxu0 0.0
    %153 = vmatpush2.msra.mxu0 0.0
    %154 = vmatprep.subr.mxu0 0.0
    %155 = vmatpush2.msra.mxu0 0.0
    %156 = vmatprep.subr.mxu0 0.0
    %157 = vmatpush2.msra.mxu0 0.0
    %158 = vmatprep.subr.mxu0 0.0
    %159 = vmatpush2.msra.mxu0 0.0
    %160 = vmatprep.subr.mxu0 0.0
    %161 = vmatpush2.msra.mxu0 0.0
    %162 = vmatprep.subr.mxu0 0.0
    %163 = vmatpush2.msra.mxu0 0.0
    %164 = vmatprep.subr.mxu0 0.0
    %165 = vmatpush2.msra.mxu0 0.0
    %166 = vmatprep.subr.mxu0 0.0
    %167 = vmatpush2.msra.mxu0 0.0
    %168 = vmatprep.subr.mxu0 0.0
    %169 = vmatpush2.msra.mxu0 0.0
    %170 = vmatprep.subr.mxu0 0.0
    %171 = vmatpush2.msra.mxu0 0.0
    %172 = vmatprep.mubr.f32.mxu0 0.0
    %173 = vmatmul.mubr.f32.gmra.mxu0 %v83
    %v174 = vpop.f32.mrf.mxu0
    %v175 = vadd.f32 %v106, %v174
    %v176 = vpop.f32.mrf.mxu0
    %177 = vmatprep.mubr.f32.mxu0 0.0
    %178 = vmatmul.mubr.f32.gmra.mxu0 %v84
    %v179 = vpop.f32.mrf.mxu0
    %v180 = vadd.f32 %v106, %v179
    %v181 = vpop.f32.mrf.mxu0
    %182 = vdwg.mxu0
    %v183 = vld [vmem:[#allocation8] sm:$0xff]
    %v184 = vld [vmem:[#allocation8 + $0x8] sm:$0xff]
    %v185 = vld [vmem:[#allocation8 + $0x10] sm:$0xff]
    %v186 = vld [vmem:[#allocation8 + $0x18] sm:$0xff]
    %v187 = vld [vmem:[#allocation8 + $0x20] sm:$0xff]
    %v188 = vld [vmem:[#allocation8 + $0x28] sm:$0xff]
    %v189 = vld [vmem:[#allocation8 + $0x30] sm:$0xff]
    %v190 = vld [vmem:[#allocation8 + $0x38] sm:$0xff]
    %v191 = vld [vmem:[#allocation8 + $0x40] sm:$0xff]
    %v192 = vld [vmem:[#allocation8 + $0x48] sm:$0xff]
    %v193 = vld [vmem:[#allocation8 + $0x50] sm:$0xff]
    %v194 = vld [vmem:[#allocation8 + $0x58] sm:$0xff]
    %v195 = vld [vmem:[#allocation8 + $0x60] sm:$0xff]
    %v196 = vld [vmem:[#allocation8 + $0x68] sm:$0xff]
    %v197 = vld [vmem:[#allocation8 + $0x70] sm:$0xff]
    %v198 = vld [vmem:[#allocation8 + $0x78] sm:$0xff]
    %v199 = vld [vmem:[#allocation8 + $0x80] sm:$0xff]
    %v200 = vld [vmem:[#allocation8 + $0x88] sm:$0xff]
    %v201 = vld [vmem:[#allocation8 + $0x90] sm:$0xff]
    %v202 = vld [vmem:[#allocation8 + $0x98] sm:$0xff]
    %v203 = vld [vmem:[#allocation8 + $0xa0] sm:$0xff]
    %v204 = vld [vmem:[#allocation8 + $0xa8] sm:$0xff]
    %v205 = vld [vmem:[#allocation8 + $0xb0] sm:$0xff]
    %v206 = vld [vmem:[#allocation8 + $0xb8] sm:$0xff]
    %v207 = vld [vmem:[#allocation8 + $0xc0] sm:$0xff]
    %v208 = vld [vmem:[#allocation8 + $0xc8] sm:$0xff]
    %v209 = vld [vmem:[#allocation8 + $0xd0] sm:$0xff]
    %v210 = vld [vmem:[#allocation8 + $0xd8] sm:$0xff]
    %v211 = vld [vmem:[#allocation8 + $0xe0] sm:$0xff]
    %v212 = vld [vmem:[#allocation8 + $0xe8] sm:$0xff]
    %v213 = vld [vmem:[#allocation8 + $0xf0] sm:$0xff]
    %v214 = vld [vmem:[#allocation8 + $0xf8] sm:$0xff]
    %v217 = vcombine.high %v175, %v175
    %v219 = vunpack.c.l.s4 1966171168
    %v220 = vunpack.c.0.s8 %v219
    %v221 = vlaneseq
    %v222 = vshrl.u32 %v221, 7
    %v223 = vsub.s32 %v220, %v222
    %v224 = vrot.slane %v175, %v223
    %v226 = vunpack.c.l.s4 1966171168
    %v227 = vunpack.c.0.s8 %v226
    %v228 = vlaneseq
    %v229 = vshrl.u32 %v228, 7
    %v230 = vsub.s32 %v227, %v229
    %v231 = vrot.slane %v217, %v230
    %v232 = vcombine.high %v224, %v224
    %v233 = vcombine.high %v231, %v231
    %v235 = vunpack.c.l.s4 1966171168
    %v236 = vunpack.c.0.s8 %v235
    %v237 = vlaneseq
    %v238 = vshrl.u32 %v237, 7
    %v239 = vsub.s32 %v236, %v238
    %v240 = vrot.slane %v224, %v239
    %v242 = vunpack.c.l.s4 1966171168
    %v243 = vunpack.c.0.s8 %v242
    %v244 = vlaneseq
    %v245 = vshrl.u32 %v244, 7
    %v246 = vsub.s32 %v243, %v245
    %v247 = vrot.slane %v231, %v246
    %v249 = vunpack.c.l.s4 1966171168
    %v250 = vunpack.c.0.s8 %v249
    %v251 = vlaneseq
    %v252 = vshrl.u32 %v251, 7
    %v253 = vsub.s32 %v250, %v252
    %v254 = vrot.slane %v232, %v253
    %v256 = vunpack.c.l.s4 1966171168
    %v257 = vunpack.c.0.s8 %v256
    %v258 = vlaneseq
    %v259 = vshrl.u32 %v258, 7
    %v260 = vsub.s32 %v257, %v259
    %v261 = vrot.slane %v233, %v260
    %v262 = vcombine.high %v240, %v240
    %v263 = vcombine.high %v247, %v247
    %v264 = vcombine.high %v254, %v254
    %v265 = vcombine.high %v261, %v261
    %v266 = vcombine.high %v180, %v180
    %v268 = vunpack.c.l.s4 1966171168
    %v269 = vunpack.c.0.s8 %v268
    %v270 = vlaneseq
    %v271 = vshrl.u32 %v270, 7
    %v272 = vsub.s32 %v269, %v271
    %v273 = vrot.slane %v180, %v272
    %v275 = vunpack.c.l.s4 1966171168
    %v276 = vunpack.c.0.s8 %v275
    %v277 = vlaneseq
    %v278 = vshrl.u32 %v277, 7
    %v279 = vsub.s32 %v276, %v278
    %v280 = vrot.slane %v266, %v279
    %v281 = vcombine.high %v273, %v273
    %v282 = vcombine.high %v280, %v280
    %v284 = vunpack.c.l.s4 1966171168
    %v285 = vunpack.c.0.s8 %v284
    %v286 = vlaneseq
    %v287 = vshrl.u32 %v286, 7
    %v288 = vsub.s32 %v285, %v287
    %v289 = vrot.slane %v273, %v288
    %v291 = vunpack.c.l.s4 1966171168
    %v292 = vunpack.c.0.s8 %v291
    %v293 = vlaneseq
    %v294 = vshrl.u32 %v293, 7
    %v295 = vsub.s32 %v292, %v294
    %v296 = vrot.slane %v280, %v295
    %v298 = vunpack.c.l.s4 1966171168
    %v299 = vunpack.c.0.s8 %v298
    %v300 = vlaneseq
    %v301 = vshrl.u32 %v300, 7
    %v302 = vsub.s32 %v299, %v301
    %v303 = vrot.slane %v281, %v302
    %v305 = vunpack.c.l.s4 1966171168
    %v306 = vunpack.c.0.s8 %v305
    %v307 = vlaneseq
    %v308 = vshrl.u32 %v307, 7
    %v309 = vsub.s32 %v306, %v308
    %v310 = vrot.slane %v282, %v309
    %v311 = vcombine.high %v289, %v289
    %v312 = vcombine.high %v296, %v296
    %v313 = vcombine.high %v303, %v303
    %v314 = vcombine.high %v310, %v310
    %v315 = vlaneseq
    %v316 = vshrl.u32 %v315, 7
    %v317 = vsub.s32 0, %v316
    %v318 = vrot.slane %v240, %v317
    %v319 = vlaneseq
    %v320 = vshrl.u32 %v319, 7
    %v321 = vsub.s32 0, %v320
    %v322 = vrot.slane %v254, %v321
    %v323 = vlaneseq
    %v324 = vshrl.u32 %v323, 7
    %v325 = vsub.s32 0, %v324
    %v326 = vrot.slane %v262, %v325
    %v327 = vlaneseq
    %v328 = vshrl.u32 %v327, 7
    %v329 = vsub.s32 0, %v328
    %v330 = vrot.slane %v264, %v329
    %v331 = vlaneseq
    %v332 = vshrl.u32 %v331, 7
    %v333 = vsub.s32 0, %v332
    %v334 = vrot.slane %v247, %v333
    %v335 = vlaneseq
    %v336 = vshrl.u32 %v335, 7
    %v337 = vsub.s32 0, %v336
    %v338 = vrot.slane %v261, %v337
    %v339 = vlaneseq
    %v340 = vshrl.u32 %v339, 7
    %v341 = vsub.s32 0, %v340
    %v342 = vrot.slane %v263, %v341
    %v343 = vlaneseq
    %v344 = vshrl.u32 %v343, 7
    %v345 = vsub.s32 0, %v344
    %v346 = vrot.slane %v265, %v345
    %v347 = vlaneseq
    %v348 = vshrl.u32 %v347, 7
    %v349 = vsub.s32 0, %v348
    %v350 = vrot.slane %v289, %v349
    %v351 = vlaneseq
    %v352 = vshrl.u32 %v351, 7
    %v353 = vsub.s32 0, %v352
    %v354 = vrot.slane %v303, %v353
    %v355 = vlaneseq
    %v356 = vshrl.u32 %v355, 7
    %v357 = vsub.s32 0, %v356
    %v358 = vrot.slane %v311, %v357
    %v359 = vlaneseq
    %v360 = vshrl.u32 %v359, 7
    %v361 = vsub.s32 0, %v360
    %v362 = vrot.slane %v313, %v361
    %v363 = vlaneseq
    %v364 = vshrl.u32 %v363, 7
    %v365 = vsub.s32 0, %v364
    %v366 = vrot.slane %v296, %v365
    %v367 = vlaneseq
    %v368 = vshrl.u32 %v367, 7
    %v369 = vsub.s32 0, %v368
    %v370 = vrot.slane %v310, %v369
    %v371 = vlaneseq
    %v372 = vshrl.u32 %v371, 7
    %v373 = vsub.s32 0, %v372
    %v374 = vrot.slane %v312, %v373
    %v375 = vlaneseq
    %v376 = vshrl.u32 %v375, 7
    %v377 = vsub.s32 0, %v376
    %v378 = vrot.slane %v314, %v377
    %v395 = vadd.f32 %v183, %v318
    %v396 = vadd.f32 %v184, %v318
    %v397 = vadd.f32 %v185, %v322
    %v398 = vadd.f32 %v186, %v322
    %v399 = vadd.f32 %v187, %v326
    %v400 = vadd.f32 %v188, %v326
    %v401 = vadd.f32 %v189, %v330
    %v402 = vadd.f32 %v190, %v330
    %v403 = vadd.f32 %v191, %v334
    %v404 = vadd.f32 %v192, %v334
    %v405 = vadd.f32 %v193, %v338
    %v406 = vadd.f32 %v194, %v338
    %v407 = vadd.f32 %v195, %v342
    %v408 = vadd.f32 %v196, %v342
    %v409 = vadd.f32 %v197, %v346
    %v410 = vadd.f32 %v198, %v346
    %v411 = vadd.f32 %v199, %v350
    %v412 = vadd.f32 %v200, %v350
    %v413 = vadd.f32 %v201, %v354
    %v414 = vadd.f32 %v202, %v354
    %v415 = vadd.f32 %v203, %v358
    %v416 = vadd.f32 %v204, %v358
    %v417 = vadd.f32 %v205, %v362
    %v418 = vadd.f32 %v206, %v362
    %v419 = vadd.f32 %v207, %v366
    %v420 = vadd.f32 %v208, %v366
    %v421 = vadd.f32 %v209, %v370
    %v422 = vadd.f32 %v210, %v370
    %v423 = vadd.f32 %v211, %v374
    %v424 = vadd.f32 %v212, %v374
    %v425 = vadd.f32 %v213, %v378
    %v426 = vadd.f32 %v214, %v378
    %v427 = vtanh.pop %v395
    %v428 = vtanh.pop %v396
    %v429 = vtanh.pop %v397
    %v430 = vtanh.pop %v398
    %v431 = vtanh.pop %v399
    %v432 = vtanh.pop %v400
    %v433 = vtanh.pop %v401
    %v434 = vtanh.pop %v402
    %v435 = vtanh.pop %v403
    %v436 = vtanh.pop %v404
    %v437 = vtanh.pop %v405
    %v438 = vtanh.pop %v406
    %v439 = vtanh.pop %v407
    %v440 = vtanh.pop %v408
    %v441 = vtanh.pop %v409
    %v442 = vtanh.pop %v410
    %v443 = vtanh.pop %v411
    %v444 = vtanh.pop %v412
    %v445 = vtanh.pop %v413
    %v446 = vtanh.pop %v414
    %v447 = vtanh.pop %v415
    %v448 = vtanh.pop %v416
    %v449 = vtanh.pop %v417
    %v450 = vtanh.pop %v418
    %v451 = vtanh.pop %v419
    %v452 = vtanh.pop %v420
    %v453 = vtanh.pop %v421
    %v454 = vtanh.pop %v422
    %v455 = vtanh.pop %v423
    %v456 = vtanh.pop %v424
    %v457 = vtanh.pop %v425
    %v458 = vtanh.pop %v426
    %v459 = vld [vmem:[%s5] sm:$0x1]
    %v461 = vlaneseq
    %v462 = vshrl.u32 %v461, 7
    %v463 = vsub.s32 0, %v462
    %v464 = vrot.slane %v459, %v463
    %v466 = vmul.f32 %v427, %v464
    %v467 = vmul.f32 %v428, %v464
    %v468 = vmul.f32 %v429, %v464
    %v469 = vmul.f32 %v430, %v464
    %v470 = vmul.f32 %v431, %v464
    %v471 = vmul.f32 %v432, %v464
    %v472 = vmul.f32 %v433, %v464
    %v473 = vmul.f32 %v434, %v464
    %v474 = vmul.f32 %v435, %v464
    %v475 = vmul.f32 %v436, %v464
    %v476 = vmul.f32 %v437, %v464
    %v477 = vmul.f32 %v438, %v464
    %v478 = vmul.f32 %v439, %v464
    %v479 = vmul.f32 %v440, %v464
    %v480 = vmul.f32 %v441, %v464
    %v481 = vmul.f32 %v442, %v464
    %v482 = vmul.f32 %v443, %v464
    %v483 = vmul.f32 %v444, %v464
    %v484 = vmul.f32 %v445, %v464
    %v485 = vmul.f32 %v446, %v464
    %v486 = vmul.f32 %v447, %v464
    %v487 = vmul.f32 %v448, %v464
    %v488 = vmul.f32 %v449, %v464
    %v489 = vmul.f32 %v450, %v464
    %v490 = vmul.f32 %v451, %v464
    %v491 = vmul.f32 %v452, %v464
    %v492 = vmul.f32 %v453, %v464
    %v493 = vmul.f32 %v454, %v464
    %v494 = vmul.f32 %v455, %v464
    %v495 = vmul.f32 %v456, %v464
    %v496 = vmul.f32 %v457, %v464
    %v497 = vmul.f32 %v458, %v464
    %498 = vadd.xlane.f32.xlu0 %v466
    %v499 = vpop.xlane.xlu0 %498
    %500 = vadd.xlane.f32.xlu0 %v467
    %v501 = vpop.xlane.xlu0 %500
    %502 = vadd.xlane.f32.xlu0 %v468
    %v503 = vpop.xlane.xlu0 %502
    %504 = vadd.xlane.f32.xlu0 %v469
    %v505 = vpop.xlane.xlu0 %504
    %506 = vadd.xlane.f32.xlu0 %v470
    %v507 = vpop.xlane.xlu0 %506
    %508 = vadd.xlane.f32.xlu0 %v471
    %v509 = vpop.xlane.xlu0 %508
    %510 = vadd.xlane.f32.xlu0 %v472
    %v511 = vpop.xlane.xlu0 %510
    %512 = vadd.xlane.f32.xlu0 %v473
    %v513 = vpop.xlane.xlu0 %512
    %514 = vadd.xlane.f32.xlu0 %v474
    %v515 = vpop.xlane.xlu0 %514
    %516 = vadd.xlane.f32.xlu0 %v475
    %v517 = vpop.xlane.xlu0 %516
    %518 = vadd.xlane.f32.xlu0 %v476
    %v519 = vpop.xlane.xlu0 %518
    %520 = vadd.xlane.f32.xlu0 %v477
    %v521 = vpop.xlane.xlu0 %520
    %522 = vadd.xlane.f32.xlu0 %v478
    %v523 = vpop.xlane.xlu0 %522
    %524 = vadd.xlane.f32.xlu0 %v479
    %v525 = vpop.xlane.xlu0 %524
    %526 = vadd.xlane.f32.xlu0 %v480
    %v527 = vpop.xlane.xlu0 %526
    %528 = vadd.xlane.f32.xlu0 %v481
    %v529 = vpop.xlane.xlu0 %528
    %530 = vadd.xlane.f32.xlu0 %v482
    %v531 = vpop.xlane.xlu0 %530
    %532 = vadd.xlane.f32.xlu0 %v483
    %v533 = vpop.xlane.xlu0 %532
    %534 = vadd.xlane.f32.xlu0 %v484
    %v535 = vpop.xlane.xlu0 %534
    %536 = vadd.xlane.f32.xlu0 %v485
    %v537 = vpop.xlane.xlu0 %536
    %538 = vadd.xlane.f32.xlu0 %v486
    %v539 = vpop.xlane.xlu0 %538
    %540 = vadd.xlane.f32.xlu0 %v487
    %v541 = vpop.xlane.xlu0 %540
    %542 = vadd.xlane.f32.xlu0 %v488
    %v543 = vpop.xlane.xlu0 %542
    %544 = vadd.xlane.f32.xlu0 %v489
    %v545 = vpop.xlane.xlu0 %544
    %546 = vadd.xlane.f32.xlu0 %v490
    %v547 = vpop.xlane.xlu0 %546
    %548 = vadd.xlane.f32.xlu0 %v491
    %v549 = vpop.xlane.xlu0 %548
    %550 = vadd.xlane.f32.xlu0 %v492
    %v551 = vpop.xlane.xlu0 %550
    %552 = vadd.xlane.f32.xlu0 %v493
    %v553 = vpop.xlane.xlu0 %552
    %554 = vadd.xlane.f32.xlu0 %v494
    %v555 = vpop.xlane.xlu0 %554
    %556 = vadd.xlane.f32.xlu0 %v495
    %v557 = vpop.xlane.xlu0 %556
    %558 = vadd.xlane.f32.xlu0 %v496
    %v559 = vpop.xlane.xlu0 %558
    %560 = vadd.xlane.f32.xlu0 %v497
    %v561 = vpop.xlane.xlu0 %560
    %s562 = sld [smem:[#allocation2]]
    %v563 = vstv %s562
    %v564 = vadd.f32 %v499, %v563
    %v565 = vadd.f32 %v501, %v563
    %v566 = vadd.f32 %v503, %v563
    %v567 = vadd.f32 %v505, %v563
    %v568 = vadd.f32 %v507, %v563
    %v569 = vadd.f32 %v509, %v563
    %v570 = vadd.f32 %v511, %v563
    %v571 = vadd.f32 %v513, %v563
    %v572 = vadd.f32 %v515, %v563
    %v573 = vadd.f32 %v517, %v563
    %v574 = vadd.f32 %v519, %v563
    %v575 = vadd.f32 %v521, %v563
    %v576 = vadd.f32 %v523, %v563
    %v577 = vadd.f32 %v525, %v563
    %v578 = vadd.f32 %v527, %v563
    %v579 = vadd.f32 %v529, %v563
    %v580 = vadd.f32 %v531, %v563
    %v581 = vadd.f32 %v533, %v563
    %v582 = vadd.f32 %v535, %v563
    %v583 = vadd.f32 %v537, %v563
    %v584 = vadd.f32 %v539, %v563
    %v585 = vadd.f32 %v541, %v563
    %v586 = vadd.f32 %v543, %v563
    %v587 = vadd.f32 %v545, %v563
    %v588 = vadd.f32 %v547, %v563
    %v589 = vadd.f32 %v549, %v563
    %v590 = vadd.f32 %v551, %v563
    %v591 = vadd.f32 %v553, %v563
    %v592 = vadd.f32 %v555, %v563
    %v593 = vadd.f32 %v557, %v563
    %v594 = vadd.f32 %v559, %v563
    %v595 = vadd.f32 %v561, %v563
    %v628 = vlaneseq
    %v629 = vand.u32 %v628, 127
    %v630 = vlaneseq
    %v631 = vshrl.u32 %v630, 7
    %v632 = vsub.s32 %v629, %v631
    %v633 = vrot.slane %v564, %v632
    %v634 = vadd.s32 %v629, 4294967288
    %v635 = vlaneseq
    %v636 = vshrl.u32 %v635, 7
    %v637 = vsub.s32 %v634, %v636
    %v638 = vrot.slane %v565, %v637
    %vm639 = vcmask 130112
    %v640 = vsel %vm639, %v638, %v633
    %v641 = vlaneseq
    %v642 = vshrl.u32 %v641, 7
    %v643 = vsub.s32 %v629, %v642
    %v644 = vrot.slane %v566, %v643
    %v645 = vlaneseq
    %v646 = vshrl.u32 %v645, 7
    %v647 = vsub.s32 %v634, %v646
    %v648 = vrot.slane %v567, %v647
    %v649 = vsel %vm639, %v648, %v644
    %v650 = vlaneseq
    %v651 = vshrl.u32 %v650, 7
    %v652 = vsub.s32 %v629, %v651
    %v653 = vrot.slane %v568, %v652
    %v654 = vlaneseq
    %v655 = vshrl.u32 %v654, 7
    %v656 = vsub.s32 %v634, %v655
    %v657 = vrot.slane %v569, %v656
    %v658 = vsel %vm639, %v657, %v653
    %v659 = vlaneseq
    %v660 = vshrl.u32 %v659, 7
    %v661 = vsub.s32 %v629, %v660
    %v662 = vrot.slane %v570, %v661
    %v663 = vlaneseq
    %v664 = vshrl.u32 %v663, 7
    %v665 = vsub.s32 %v634, %v664
    %v666 = vrot.slane %v571, %v665
    %v667 = vsel %vm639, %v666, %v662
    %v668 = vlaneseq
    %v669 = vshrl.u32 %v668, 7
    %v670 = vsub.s32 %v629, %v669
    %v671 = vrot.slane %v572, %v670
    %v672 = vlaneseq
    %v673 = vshrl.u32 %v672, 7
    %v674 = vsub.s32 %v634, %v673
    %v675 = vrot.slane %v573, %v674
    %v676 = vsel %vm639, %v675, %v671
    %v677 = vlaneseq
    %v678 = vshrl.u32 %v677, 7
    %v679 = vsub.s32 %v629, %v678
    %v680 = vrot.slane %v574, %v679
    %v681 = vlaneseq
    %v682 = vshrl.u32 %v681, 7
    %v683 = vsub.s32 %v634, %v682
    %v684 = vrot.slane %v575, %v683
    %v685 = vsel %vm639, %v684, %v680
    %v686 = vlaneseq
    %v687 = vshrl.u32 %v686, 7
    %v688 = vsub.s32 %v629, %v687
    %v689 = vrot.slane %v576, %v688
    %v690 = vlaneseq
    %v691 = vshrl.u32 %v690, 7
    %v692 = vsub.s32 %v634, %v691
    %v693 = vrot.slane %v577, %v692
    %v694 = vsel %vm639, %v693, %v689
    %v695 = vlaneseq
    %v696 = vshrl.u32 %v695, 7
    %v697 = vsub.s32 %v629, %v696
    %v698 = vrot.slane %v578, %v697
    %v699 = vlaneseq
    %v700 = vshrl.u32 %v699, 7
    %v701 = vsub.s32 %v634, %v700
    %v702 = vrot.slane %v579, %v701
    %v703 = vsel %vm639, %v702, %v698
    %v704 = vlaneseq
    %v705 = vshrl.u32 %v704, 7
    %v706 = vsub.s32 %v629, %v705
    %v707 = vrot.slane %v580, %v706
    %v708 = vlaneseq
    %v709 = vshrl.u32 %v708, 7
    %v710 = vsub.s32 %v634, %v709
    %v711 = vrot.slane %v581, %v710
    %v712 = vsel %vm639, %v711, %v707
    %v713 = vlaneseq
    %v714 = vshrl.u32 %v713, 7
    %v715 = vsub.s32 %v629, %v714
    %v716 = vrot.slane %v582, %v715
    %v717 = vlaneseq
    %v718 = vshrl.u32 %v717, 7
    %v719 = vsub.s32 %v634, %v718
    %v720 = vrot.slane %v583, %v719
    %v721 = vsel %vm639, %v720, %v716
    %v722 = vlaneseq
    %v723 = vshrl.u32 %v722, 7
    %v724 = vsub.s32 %v629, %v723
    %v725 = vrot.slane %v584, %v724
    %v726 = vlaneseq
    %v727 = vshrl.u32 %v726, 7
    %v728 = vsub.s32 %v634, %v727
    %v729 = vrot.slane %v585, %v728
    %v730 = vsel %vm639, %v729, %v725
    %v731 = vlaneseq
    %v732 = vshrl.u32 %v731, 7
    %v733 = vsub.s32 %v629, %v732
    %v734 = vrot.slane %v586, %v733
    %v735 = vlaneseq
    %v736 = vshrl.u32 %v735, 7
    %v737 = vsub.s32 %v634, %v736
    %v738 = vrot.slane %v587, %v737
    %v739 = vsel %vm639, %v738, %v734
    %v740 = vlaneseq
    %v741 = vshrl.u32 %v740, 7
    %v742 = vsub.s32 %v629, %v741
    %v743 = vrot.slane %v588, %v742
    %v744 = vlaneseq
    %v745 = vshrl.u32 %v744, 7
    %v746 = vsub.s32 %v634, %v745
    %v747 = vrot.slane %v589, %v746
    %v748 = vsel %vm639, %v747, %v743
    %v749 = vlaneseq
    %v750 = vshrl.u32 %v749, 7
    %v751 = vsub.s32 %v629, %v750
    %v752 = vrot.slane %v590, %v751
    %v753 = vlaneseq
    %v754 = vshrl.u32 %v753, 7
    %v755 = vsub.s32 %v634, %v754
    %v756 = vrot.slane %v591, %v755
    %v757 = vsel %vm639, %v756, %v752
    %v758 = vlaneseq
    %v759 = vshrl.u32 %v758, 7
    %v760 = vsub.s32 %v629, %v759
    %v761 = vrot.slane %v592, %v760
    %v762 = vlaneseq
    %v763 = vshrl.u32 %v762, 7
    %v764 = vsub.s32 %v634, %v763
    %v765 = vrot.slane %v593, %v764
    %v766 = vsel %vm639, %v765, %v761
    %v767 = vlaneseq
    %v768 = vshrl.u32 %v767, 7
    %v769 = vsub.s32 %v629, %v768
    %v770 = vrot.slane %v594, %v769
    %v771 = vlaneseq
    %v772 = vshrl.u32 %v771, 7
    %v773 = vsub.s32 %v634, %v772
    %v774 = vrot.slane %v595, %v773
    %v775 = vsel %vm639, %v774, %v770
    %vm776 = vcmask 1041409
    %v777 = vsel %vm776, %v649, %v640
    %vm778 = vcmask 1042434
    %v779 = vsel %vm778, %v658, %v777
    %vm780 = vcmask 1043459
    %v781 = vsel %vm780, %v667, %v779
    %vm782 = vcmask 1044484
    %v783 = vsel %vm782, %v676, %v781
    %vm784 = vcmask 1045509
    %v785 = vsel %vm784, %v685, %v783
    %vm786 = vcmask 1046534
    %v787 = vsel %vm786, %v694, %v785
    %vm788 = vcmask 1047559
    %v789 = vsel %vm788, %v703, %v787
    %v790 = vsel %vm776, %v721, %v712
    %v791 = vsel %vm778, %v730, %v790
    %v792 = vsel %vm780, %v739, %v791
    %v793 = vsel %vm782, %v748, %v792
    %v794 = vsel %vm784, %v757, %v793
    %v795 = vsel %vm786, %v766, %v794
    %v796 = vsel %vm788, %v775, %v795
    %vm799 = vcmask 130048
    %v800 = vsel %vm799, %v789, -inf
    %801 = vmax.xlane.f32.xlu0 %v800
    %v802 = vpop.xlane.xlu0 %801
    %v803 = vsel %vm799, %v796, -inf
    %804 = vmax.xlane.f32.xlu0 %v803
    %v805 = vpop.xlane.xlu0 %804
    %v808 = vlaneseq
    %v809 = vshrl.u32 %v808, 7
    %v810 = vsub.s32 0, %v809
    %v811 = vrot.slane %v802, %v810
    %v812 = vlaneseq
    %v813 = vshrl.u32 %v812, 7
    %v814 = vsub.s32 1, %v813
    %v815 = vrot.slane %v802, %v814
    %v816 = vlaneseq
    %v817 = vshrl.u32 %v816, 7
    %v818 = vsub.s32 2, %v817
    %v819 = vrot.slane %v802, %v818
    %v820 = vlaneseq
    %v821 = vshrl.u32 %v820, 7
    %v822 = vsub.s32 3, %v821
    %v823 = vrot.slane %v802, %v822
    %v824 = vlaneseq
    %v825 = vshrl.u32 %v824, 7
    %v826 = vsub.s32 4, %v825
    %v827 = vrot.slane %v802, %v826
    %v828 = vlaneseq
    %v829 = vshrl.u32 %v828, 7
    %v830 = vsub.s32 5, %v829
    %v831 = vrot.slane %v802, %v830
    %v832 = vlaneseq
    %v833 = vshrl.u32 %v832, 7
    %v834 = vsub.s32 6, %v833
    %v835 = vrot.slane %v802, %v834
    %v836 = vlaneseq
    %v837 = vshrl.u32 %v836, 7
    %v838 = vsub.s32 7, %v837
    %v839 = vrot.slane %v802, %v838
    %v840 = vlaneseq
    %v841 = vshrl.u32 %v840, 7
    %v842 = vsub.s32 0, %v841
    %v843 = vrot.slane %v805, %v842
    %v844 = vlaneseq
    %v845 = vshrl.u32 %v844, 7
    %v846 = vsub.s32 1, %v845
    %v847 = vrot.slane %v805, %v846
    %v848 = vlaneseq
    %v849 = vshrl.u32 %v848, 7
    %v850 = vsub.s32 2, %v849
    %v851 = vrot.slane %v805, %v850
    %v852 = vlaneseq
    %v853 = vshrl.u32 %v852, 7
    %v854 = vsub.s32 3, %v853
    %v855 = vrot.slane %v805, %v854
    %v856 = vlaneseq
    %v857 = vshrl.u32 %v856, 7
    %v858 = vsub.s32 4, %v857
    %v859 = vrot.slane %v805, %v858
    %v860 = vlaneseq
    %v861 = vshrl.u32 %v860, 7
    %v862 = vsub.s32 5, %v861
    %v863 = vrot.slane %v805, %v862
    %v864 = vlaneseq
    %v865 = vshrl.u32 %v864, 7
    %v866 = vsub.s32 6, %v865
    %v867 = vrot.slane %v805, %v866
    %v868 = vlaneseq
    %v869 = vshrl.u32 %v868, 7
    %v870 = vsub.s32 7, %v869
    %v871 = vrot.slane %v805, %v870
    %v888 = vsub.f32 %v564, %v811
    %v889 = vsub.f32 %v565, %v811
    %v890 = vsub.f32 %v566, %v815
    %v891 = vsub.f32 %v567, %v815
    %v892 = vsub.f32 %v568, %v819
    %v893 = vsub.f32 %v569, %v819
    %v894 = vsub.f32 %v570, %v823
    %v895 = vsub.f32 %v571, %v823
    %v896 = vsub.f32 %v572, %v827
    %v897 = vsub.f32 %v573, %v827
    %v898 = vsub.f32 %v574, %v831
    %v899 = vsub.f32 %v575, %v831
    %v900 = vsub.f32 %v576, %v835
    %v901 = vsub.f32 %v577, %v835
    %v902 = vsub.f32 %v578, %v839
    %v903 = vsub.f32 %v579, %v839
    %v904 = vsub.f32 %v580, %v843
    %v905 = vsub.f32 %v581, %v843
    %v906 = vsub.f32 %v582, %v847
    %v907 = vsub.f32 %v583, %v847
    %v908 = vsub.f32 %v584, %v851
    %v909 = vsub.f32 %v585, %v851
    %v910 = vsub.f32 %v586, %v855
    %v911 = vsub.f32 %v587, %v855
    %v912 = vsub.f32 %v588, %v859
    %v913 = vsub.f32 %v589, %v859
    %v914 = vsub.f32 %v590, %v863
    %v915 = vsub.f32 %v591, %v863
    %v916 = vsub.f32 %v592, %v867
    %v917 = vsub.f32 %v593, %v867
    %v918 = vsub.f32 %v594, %v871
    %v919 = vsub.f32 %v595, %v871
    %v920 = vmul.f32 %v888, 1.442695
    %v921 = vpow.pop %v920
    %v922 = vmul.f32 %v889, 1.442695
    %v923 = vpow.pop %v922
    %v924 = vmul.f32 %v890, 1.442695
    %v925 = vpow.pop %v924
    %v926 = vmul.f32 %v891, 1.442695
    %v927 = vpow.pop %v926
    %v928 = vmul.f32 %v892, 1.442695
    %v929 = vpow.pop %v928
    %v930 = vmul.f32 %v893, 1.442695
    %v931 = vpow.pop %v930
    %v932 = vmul.f32 %v894, 1.442695
    %v933 = vpow.pop %v932
    %v934 = vmul.f32 %v895, 1.442695
    %v935 = vpow.pop %v934
    %v936 = vmul.f32 %v896, 1.442695
    %v937 = vpow.pop %v936
    %v938 = vmul.f32 %v897, 1.442695
    %v939 = vpow.pop %v938
    %v940 = vmul.f32 %v898, 1.442695
    %v941 = vpow.pop %v940
    %v942 = vmul.f32 %v899, 1.442695
    %v943 = vpow.pop %v942
    %v944 = vmul.f32 %v900, 1.442695
    %v945 = vpow.pop %v944
    %v946 = vmul.f32 %v901, 1.442695
    %v947 = vpow.pop %v946
    %v948 = vmul.f32 %v902, 1.442695
    %v949 = vpow.pop %v948
    %v950 = vmul.f32 %v903, 1.442695
    %v951 = vpow.pop %v950
    %v952 = vmul.f32 %v904, 1.442695
    %v953 = vpow.pop %v952
    %v954 = vmul.f32 %v905, 1.442695
    %v955 = vpow.pop %v954
    %v956 = vmul.f32 %v906, 1.442695
    %v957 = vpow.pop %v956
    %v958 = vmul.f32 %v907, 1.442695
    %v959 = vpow.pop %v958
    %v960 = vmul.f32 %v908, 1.442695
    %v961 = vpow.pop %v960
    %v962 = vmul.f32 %v909, 1.442695
    %v963 = vpow.pop %v962
    %v964 = vmul.f32 %v910, 1.442695
    %v965 = vpow.pop %v964
    %v966 = vmul.f32 %v911, 1.442695
    %v967 = vpow.pop %v966
    %v968 = vmul.f32 %v912, 1.442695
    %v969 = vpow.pop %v968
    %v970 = vmul.f32 %v913, 1.442695
    %v971 = vpow.pop %v970
    %v972 = vmul.f32 %v914, 1.442695
    %v973 = vpow.pop %v972
    %v974 = vmul.f32 %v915, 1.442695
    %v975 = vpow.pop %v974
    %v976 = vmul.f32 %v916, 1.442695
    %v977 = vpow.pop %v976
    %v978 = vmul.f32 %v917, 1.442695
    %v979 = vpow.pop %v978
    %v980 = vmul.f32 %v918, 1.442695
    %v981 = vpow.pop %v980
    %v982 = vmul.f32 %v919, 1.442695
    %v983 = vpow.pop %v982
    %1016 = vset.pattern.permute.xlu0 0
    %1017 = vperm.xlu0 %1016, %v921
    %v1018 = vpop.permute.xlu0 %1017
    %1019 = vset.pattern.permute.xlu0 0
    %1020 = vperm.xlu0 %1019, %v923
    %v1021 = vpop.permute.xlu0 %1020
    %1022 = vset.pattern.permute.xlu0 0
    %1023 = vperm.xlu0 %1022, %v925
    %v1024 = vpop.permute.xlu0 %1023
    %1025 = vset.pattern.permute.xlu0 0
    %1026 = vperm.xlu0 %1025, %v927
    %v1027 = vpop.permute.xlu0 %1026
    %1028 = vset.pattern.permute.xlu0 0
    %1029 = vperm.xlu0 %1028, %v929
    %v1030 = vpop.permute.xlu0 %1029
    %1031 = vset.pattern.permute.xlu0 0
    %1032 = vperm.xlu0 %1031, %v931
    %v1033 = vpop.permute.xlu0 %1032
    %1034 = vset.pattern.permute.xlu0 0
    %1035 = vperm.xlu0 %1034, %v933
    %v1036 = vpop.permute.xlu0 %1035
    %1037 = vset.pattern.permute.xlu0 0
    %1038 = vperm.xlu0 %1037, %v935
    %v1039 = vpop.permute.xlu0 %1038
    %1040 = vset.pattern.permute.xlu0 0
    %1041 = vperm.xlu0 %1040, %v937
    %v1042 = vpop.permute.xlu0 %1041
    %1043 = vset.pattern.permute.xlu0 0
    %1044 = vperm.xlu0 %1043, %v939
    %v1045 = vpop.permute.xlu0 %1044
    %1046 = vset.pattern.permute.xlu0 0
    %1047 = vperm.xlu0 %1046, %v941
    %v1048 = vpop.permute.xlu0 %1047
    %1049 = vset.pattern.permute.xlu0 0
    %1050 = vperm.xlu0 %1049, %v943
    %v1051 = vpop.permute.xlu0 %1050
    %1052 = vset.pattern.permute.xlu0 0
    %1053 = vperm.xlu0 %1052, %v945
    %v1054 = vpop.permute.xlu0 %1053
    %1055 = vset.pattern.permute.xlu0 0
    %1056 = vperm.xlu0 %1055, %v947
    %v1057 = vpop.permute.xlu0 %1056
    %1058 = vset.pattern.permute.xlu0 0
    %1059 = vperm.xlu0 %1058, %v949
    %v1060 = vpop.permute.xlu0 %1059
    %1061 = vset.pattern.permute.xlu0 0
    %1062 = vperm.xlu0 %1061, %v951
    %v1063 = vpop.permute.xlu0 %1062
    %1064 = vset.pattern.permute.xlu0 0
    %1065 = vperm.xlu0 %1064, %v953
    %v1066 = vpop.permute.xlu0 %1065
    %1067 = vset.pattern.permute.xlu0 0
    %1068 = vperm.xlu0 %1067, %v955
    %v1069 = vpop.permute.xlu0 %1068
    %1070 = vset.pattern.permute.xlu0 0
    %1071 = vperm.xlu0 %1070, %v957
    %v1072 = vpop.permute.xlu0 %1071
    %1073 = vset.pattern.permute.xlu0 0
    %1074 = vperm.xlu0 %1073, %v959
    %v1075 = vpop.permute.xlu0 %1074
    %1076 = vset.pattern.permute.xlu0 0
    %1077 = vperm.xlu0 %1076, %v961
    %v1078 = vpop.permute.xlu0 %1077
    %1079 = vset.pattern.permute.xlu0 0
    %1080 = vperm.xlu0 %1079, %v963
    %v1081 = vpop.permute.xlu0 %1080
    %1082 = vset.pattern.permute.xlu0 0
    %1083 = vperm.xlu0 %1082, %v965
    %v1084 = vpop.permute.xlu0 %1083
    %1085 = vset.pattern.permute.xlu0 0
    %1086 = vperm.xlu0 %1085, %v967
    %v1087 = vpop.permute.xlu0 %1086
    %1088 = vset.pattern.permute.xlu0 0
    %1089 = vperm.xlu0 %1088, %v969
    %v1090 = vpop.permute.xlu0 %1089
    %1091 = vset.pattern.permute.xlu0 0
    %1092 = vperm.xlu0 %1091, %v971
    %v1093 = vpop.permute.xlu0 %1092
    %1094 = vset.pattern.permute.xlu0 0
    %1095 = vperm.xlu0 %1094, %v973
    %v1096 = vpop.permute.xlu0 %1095
    %1097 = vset.pattern.permute.xlu0 0
    %1098 = vperm.xlu0 %1097, %v975
    %v1099 = vpop.permute.xlu0 %1098
    %1100 = vset.pattern.permute.xlu0 0
    %1101 = vperm.xlu0 %1100, %v977
    %v1102 = vpop.permute.xlu0 %1101
    %1103 = vset.pattern.permute.xlu0 0
    %1104 = vperm.xlu0 %1103, %v979
    %v1105 = vpop.permute.xlu0 %1104
    %1106 = vset.pattern.permute.xlu0 0
    %1107 = vperm.xlu0 %1106, %v981
    %v1108 = vpop.permute.xlu0 %1107
    %1109 = vset.pattern.permute.xlu0 0
    %1110 = vperm.xlu0 %1109, %v983
    %v1111 = vpop.permute.xlu0 %1110
    %v1112 = vlaneseq
    %v1113 = vshrl.u32 %v1112, 7
    %v1114 = vsub.s32 %v629, %v1113
    %v1115 = vrot.slane %v1018, %v1114
    %v1116 = vlaneseq
    %v1117 = vshrl.u32 %v1116, 7
    %v1118 = vsub.s32 %v634, %v1117
    %v1119 = vrot.slane %v1021, %v1118
    %v1120 = vsel %vm639, %v1119, %v1115
    %v1121 = vlaneseq
    %v1122 = vshrl.u32 %v1121, 7
    %v1123 = vsub.s32 %v629, %v1122
    %v1124 = vrot.slane %v1024, %v1123
    %v1125 = vlaneseq
    %v1126 = vshrl.u32 %v1125, 7
    %v1127 = vsub.s32 %v634, %v1126
    %v1128 = vrot.slane %v1027, %v1127
    %v1129 = vsel %vm639, %v1128, %v1124
    %v1130 = vlaneseq
    %v1131 = vshrl.u32 %v1130, 7
    %v1132 = vsub.s32 %v629, %v1131
    %v1133 = vrot.slane %v1030, %v1132
    %v1134 = vlaneseq
    %v1135 = vshrl.u32 %v1134, 7
    %v1136 = vsub.s32 %v634, %v1135
    %v1137 = vrot.slane %v1033, %v1136
    %v1138 = vsel %vm639, %v1137, %v1133
    %v1139 = vlaneseq
    %v1140 = vshrl.u32 %v1139, 7
    %v1141 = vsub.s32 %v629, %v1140
    %v1142 = vrot.slane %v1036, %v1141
    %v1143 = vlaneseq
    %v1144 = vshrl.u32 %v1143, 7
    %v1145 = vsub.s32 %v634, %v1144
    %v1146 = vrot.slane %v1039, %v1145
    %v1147 = vsel %vm639, %v1146, %v1142
    %v1148 = vlaneseq
    %v1149 = vshrl.u32 %v1148, 7
    %v1150 = vsub.s32 %v629, %v1149
    %v1151 = vrot.slane %v1042, %v1150
    %v1152 = vlaneseq
    %v1153 = vshrl.u32 %v1152, 7
    %v1154 = vsub.s32 %v634, %v1153
    %v1155 = vrot.slane %v1045, %v1154
    %v1156 = vsel %vm639, %v1155, %v1151
    %v1157 = vlaneseq
    %v1158 = vshrl.u32 %v1157, 7
    %v1159 = vsub.s32 %v629, %v1158
    %v1160 = vrot.slane %v1048, %v1159
    %v1161 = vlaneseq
    %v1162 = vshrl.u32 %v1161, 7
    %v1163 = vsub.s32 %v634, %v1162
    %v1164 = vrot.slane %v1051, %v1163
    %v1165 = vsel %vm639, %v1164, %v1160
    %v1166 = vlaneseq
    %v1167 = vshrl.u32 %v1166, 7
    %v1168 = vsub.s32 %v629, %v1167
    %v1169 = vrot.slane %v1054, %v1168
    %v1170 = vlaneseq
    %v1171 = vshrl.u32 %v1170, 7
    %v1172 = vsub.s32 %v634, %v1171
    %v1173 = vrot.slane %v1057, %v1172
    %v1174 = vsel %vm639, %v1173, %v1169
    %v1175 = vlaneseq
    %v1176 = vshrl.u32 %v1175, 7
    %v1177 = vsub.s32 %v629, %v1176
    %v1178 = vrot.slane %v1060, %v1177
    %v1179 = vlaneseq
    %v1180 = vshrl.u32 %v1179, 7
    %v1181 = vsub.s32 %v634, %v1180
    %v1182 = vrot.slane %v1063, %v1181
    %v1183 = vsel %vm639, %v1182, %v1178
    %v1184 = vlaneseq
    %v1185 = vshrl.u32 %v1184, 7
    %v1186 = vsub.s32 %v629, %v1185
    %v1187 = vrot.slane %v1066, %v1186
    %v1188 = vlaneseq
    %v1189 = vshrl.u32 %v1188, 7
    %v1190 = vsub.s32 %v634, %v1189
    %v1191 = vrot.slane %v1069, %v1190
    %v1192 = vsel %vm639, %v1191, %v1187
    %v1193 = vlaneseq
    %v1194 = vshrl.u32 %v1193, 7
    %v1195 = vsub.s32 %v629, %v1194
    %v1196 = vrot.slane %v1072, %v1195
    %v1197 = vlaneseq
    %v1198 = vshrl.u32 %v1197, 7
    %v1199 = vsub.s32 %v634, %v1198
    %v1200 = vrot.slane %v1075, %v1199
    %v1201 = vsel %vm639, %v1200, %v1196
    %v1202 = vlaneseq
    %v1203 = vshrl.u32 %v1202, 7
    %v1204 = vsub.s32 %v629, %v1203
    %v1205 = vrot.slane %v1078, %v1204
    %v1206 = vlaneseq
    %v1207 = vshrl.u32 %v1206, 7
    %v1208 = vsub.s32 %v634, %v1207
    %v1209 = vrot.slane %v1081, %v1208
    %v1210 = vsel %vm639, %v1209, %v1205
    %v1211 = vlaneseq
    %v1212 = vshrl.u32 %v1211, 7
    %v1213 = vsub.s32 %v629, %v1212
    %v1214 = vrot.slane %v1084, %v1213
    %v1215 = vlaneseq
    %v1216 = vshrl.u32 %v1215, 7
    %v1217 = vsub.s32 %v634, %v1216
    %v1218 = vrot.slane %v1087, %v1217
    %v1219 = vsel %vm639, %v1218, %v1214
    %v1220 = vlaneseq
    %v1221 = vshrl.u32 %v1220, 7
    %v1222 = vsub.s32 %v629, %v1221
    %v1223 = vrot.slane %v1090, %v1222
    %v1224 = vlaneseq
    %v1225 = vshrl.u32 %v1224, 7
    %v1226 = vsub.s32 %v634, %v1225
    %v1227 = vrot.slane %v1093, %v1226
    %v1228 = vsel %vm639, %v1227, %v1223
    %v1229 = vlaneseq
    %v1230 = vshrl.u32 %v1229, 7
    %v1231 = vsub.s32 %v629, %v1230
    %v1232 = vrot.slane %v1096, %v1231
    %v1233 = vlaneseq
    %v1234 = vshrl.u32 %v1233, 7
    %v1235 = vsub.s32 %v634, %v1234
    %v1236 = vrot.slane %v1099, %v1235
    %v1237 = vsel %vm639, %v1236, %v1232
    %v1238 = vlaneseq
    %v1239 = vshrl.u32 %v1238, 7
    %v1240 = vsub.s32 %v629, %v1239
    %v1241 = vrot.slane %v1102, %v1240
    %v1242 = vlaneseq
    %v1243 = vshrl.u32 %v1242, 7
    %v1244 = vsub.s32 %v634, %v1243
    %v1245 = vrot.slane %v1105, %v1244
    %v1246 = vsel %vm639, %v1245, %v1241
    %v1247 = vlaneseq
    %v1248 = vshrl.u32 %v1247, 7
    %v1249 = vsub.s32 %v629, %v1248
    %v1250 = vrot.slane %v1108, %v1249
    %v1251 = vlaneseq
    %v1252 = vshrl.u32 %v1251, 7
    %v1253 = vsub.s32 %v634, %v1252
    %v1254 = vrot.slane %v1111, %v1253
    %v1255 = vsel %vm639, %v1254, %v1250
    %v1256 = vsel %vm776, %v1129, %v1120
    %v1257 = vsel %vm778, %v1138, %v1256
    %v1258 = vsel %vm780, %v1147, %v1257
    %v1259 = vsel %vm782, %v1156, %v1258
    %v1260 = vsel %vm784, %v1165, %v1259
    %v1261 = vsel %vm786, %v1174, %v1260
    %v1262 = vsel %vm788, %v1183, %v1261
    %v1263 = vsel %vm776, %v1201, %v1192
    %v1264 = vsel %vm778, %v1210, %v1263
    %v1265 = vsel %vm780, %v1219, %v1264
    %v1266 = vsel %vm782, %v1228, %v1265
    %v1267 = vsel %vm784, %v1237, %v1266
    %v1268 = vsel %vm786, %v1246, %v1267
    %v1269 = vsel %vm788, %v1255, %v1268
    %v1272 = vsel %vm799, %v1262, 0.0
    %1273 = vadd.xlane.f32.xlu0 %v1272
    %v1274 = vpop.xlane.xlu0 %1273
    %v1275 = vsel %vm799, %v1269, 0.0
    %1276 = vadd.xlane.f32.xlu0 %v1275
    %v1277 = vpop.xlane.xlu0 %1276
    %v1278 = vrcp.pop %v1274
    %v1279 = vrcp.pop %v1277
    %v1282 = vlaneseq
    %v1283 = vshrl.u32 %v1282, 7
    %v1284 = vsub.s32 0, %v1283
    %v1285 = vrot.slane %v1278, %v1284
    %v1286 = vlaneseq
    %v1287 = vshrl.u32 %v1286, 7
    %v1288 = vsub.s32 1, %v1287
    %v1289 = vrot.slane %v1278, %v1288
    %v1290 = vlaneseq
    %v1291 = vshrl.u32 %v1290, 7
    %v1292 = vsub.s32 2, %v1291
    %v1293 = vrot.slane %v1278, %v1292
    %v1294 = vlaneseq
    %v1295 = vshrl.u32 %v1294, 7
    %v1296 = vsub.s32 3, %v1295
    %v1297 = vrot.slane %v1278, %v1296
    %v1298 = vlaneseq
    %v1299 = vshrl.u32 %v1298, 7
    %v1300 = vsub.s32 4, %v1299
    %v1301 = vrot.slane %v1278, %v1300
    %v1302 = vlaneseq
    %v1303 = vshrl.u32 %v1302, 7
    %v1304 = vsub.s32 5, %v1303
    %v1305 = vrot.slane %v1278, %v1304
    %v1306 = vlaneseq
    %v1307 = vshrl.u32 %v1306, 7
    %v1308 = vsub.s32 6, %v1307
    %v1309 = vrot.slane %v1278, %v1308
    %v1310 = vlaneseq
    %v1311 = vshrl.u32 %v1310, 7
    %v1312 = vsub.s32 7, %v1311
    %v1313 = vrot.slane %v1278, %v1312
    %v1314 = vlaneseq
    %v1315 = vshrl.u32 %v1314, 7
    %v1316 = vsub.s32 0, %v1315
    %v1317 = vrot.slane %v1279, %v1316
    %v1318 = vlaneseq
    %v1319 = vshrl.u32 %v1318, 7
    %v1320 = vsub.s32 1, %v1319
    %v1321 = vrot.slane %v1279, %v1320
    %v1322 = vlaneseq
    %v1323 = vshrl.u32 %v1322, 7
    %v1324 = vsub.s32 2, %v1323
    %v1325 = vrot.slane %v1279, %v1324
    %v1326 = vlaneseq
    %v1327 = vshrl.u32 %v1326, 7
    %v1328 = vsub.s32 3, %v1327
    %v1329 = vrot.slane %v1279, %v1328
    %v1330 = vlaneseq
    %v1331 = vshrl.u32 %v1330, 7
    %v1332 = vsub.s32 4, %v1331
    %v1333 = vrot.slane %v1279, %v1332
    %v1334 = vlaneseq
    %v1335 = vshrl.u32 %v1334, 7
    %v1336 = vsub.s32 5, %v1335
    %v1337 = vrot.slane %v1279, %v1336
    %v1338 = vlaneseq
    %v1339 = vshrl.u32 %v1338, 7
    %v1340 = vsub.s32 6, %v1339
    %v1341 = vrot.slane %v1279, %v1340
    %v1342 = vlaneseq
    %v1343 = vshrl.u32 %v1342, 7
    %v1344 = vsub.s32 7, %v1343
    %v1345 = vrot.slane %v1279, %v1344
    %v1362 = vmul.f32 %v921, %v1285
    %v1363 = vmul.f32 %v923, %v1285
    %v1364 = vmul.f32 %v925, %v1289
    %v1365 = vmul.f32 %v927, %v1289
    %v1366 = vmul.f32 %v929, %v1293
    %v1367 = vmul.f32 %v931, %v1293
    %v1368 = vmul.f32 %v933, %v1297
    %v1369 = vmul.f32 %v935, %v1297
    %v1370 = vmul.f32 %v937, %v1301
    %v1371 = vmul.f32 %v939, %v1301
    %v1372 = vmul.f32 %v941, %v1305
    %v1373 = vmul.f32 %v943, %v1305
    %v1374 = vmul.f32 %v945, %v1309
    %v1375 = vmul.f32 %v947, %v1309
    %v1376 = vmul.f32 %v949, %v1313
    %v1377 = vmul.f32 %v951, %v1313
    %v1378 = vmul.f32 %v953, %v1317
    %v1379 = vmul.f32 %v955, %v1317
    %v1380 = vmul.f32 %v957, %v1321
    %v1381 = vmul.f32 %v959, %v1321
    %v1382 = vmul.f32 %v961, %v1325
    %v1383 = vmul.f32 %v963, %v1325
    %v1384 = vmul.f32 %v965, %v1329
    %v1385 = vmul.f32 %v967, %v1329
    %v1386 = vmul.f32 %v969, %v1333
    %v1387 = vmul.f32 %v971, %v1333
    %v1388 = vmul.f32 %v973, %v1337
    %v1389 = vmul.f32 %v975, %v1337
    %v1390 = vmul.f32 %v977, %v1341
    %v1391 = vmul.f32 %v979, %v1341
    %v1392 = vmul.f32 %v981, %v1345
    %v1393 = vmul.f32 %v983, %v1345
    %v1394 = vld [vmem:[#allocation6] sm:$0xff]
    %v1395 = vld [vmem:[#allocation6 + $0x8] sm:$0xff]
    %v1396 = vld [vmem:[#allocation6 + $0x10] sm:$0xff]
    %v1397 = vld [vmem:[#allocation6 + $0x18] sm:$0xff]
    %v1398 = vld [vmem:[#allocation6 + $0x20] sm:$0xff]
    %v1399 = vld [vmem:[#allocation6 + $0x28] sm:$0xff]
    %v1400 = vld [vmem:[#allocation6 + $0x30] sm:$0xff]
    %v1401 = vld [vmem:[#allocation6 + $0x38] sm:$0xff]
    %v1402 = vld [vmem:[#allocation6 + $0x40] sm:$0xff]
    %v1403 = vld [vmem:[#allocation6 + $0x48] sm:$0xff]
    %v1404 = vld [vmem:[#allocation6 + $0x50] sm:$0xff]
    %v1405 = vld [vmem:[#allocation6 + $0x58] sm:$0xff]
    %v1406 = vld [vmem:[#allocation6 + $0x60] sm:$0xff]
    %v1407 = vld [vmem:[#allocation6 + $0x68] sm:$0xff]
    %v1408 = vld [vmem:[#allocation6 + $0x70] sm:$0xff]
    %v1409 = vld [vmem:[#allocation6 + $0x78] sm:$0xff]
    %v1410 = vld [vmem:[#allocation6 + $0x80] sm:$0xff]
    %v1411 = vld [vmem:[#allocation6 + $0x88] sm:$0xff]
    %v1412 = vld [vmem:[#allocation6 + $0x90] sm:$0xff]
    %v1413 = vld [vmem:[#allocation6 + $0x98] sm:$0xff]
    %v1414 = vld [vmem:[#allocation6 + $0xa0] sm:$0xff]
    %v1415 = vld [vmem:[#allocation6 + $0xa8] sm:$0xff]
    %v1416 = vld [vmem:[#allocation6 + $0xb0] sm:$0xff]
    %v1417 = vld [vmem:[#allocation6 + $0xb8] sm:$0xff]
    %v1418 = vld [vmem:[#allocation6 + $0xc0] sm:$0xff]
    %v1419 = vld [vmem:[#allocation6 + $0xc8] sm:$0xff]
    %v1420 = vld [vmem:[#allocation6 + $0xd0] sm:$0xff]
    %v1421 = vld [vmem:[#allocation6 + $0xd8] sm:$0xff]
    %v1422 = vld [vmem:[#allocation6 + $0xe0] sm:$0xff]
    %v1423 = vld [vmem:[#allocation6 + $0xe8] sm:$0xff]
    %v1424 = vld [vmem:[#allocation6 + $0xf0] sm:$0xff]
    %v1425 = vld [vmem:[#allocation6 + $0xf8] sm:$0xff]
    %1427 = vset.pattern.permute.xlu0 0
    %1428 = vperm.xlu0 %1427, %v1362
    %v1429 = vpop.permute.xlu0 %1428
    %1432 = vset.pattern.permute.xlu0 0
    %1433 = vperm.xlu0 %1432, %v1363
    %v1434 = vpop.permute.xlu0 %1433
    %1437 = vset.pattern.permute.xlu0 0
    %1438 = vperm.xlu0 %1437, %v1364
    %v1439 = vpop.permute.xlu0 %1438
    %1442 = vset.pattern.permute.xlu0 0
    %1443 = vperm.xlu0 %1442, %v1365
    %v1444 = vpop.permute.xlu0 %1443
    %1447 = vset.pattern.permute.xlu0 0
    %1448 = vperm.xlu0 %1447, %v1366
    %v1449 = vpop.permute.xlu0 %1448
    %1452 = vset.pattern.permute.xlu0 0
    %1453 = vperm.xlu0 %1452, %v1367
    %v1454 = vpop.permute.xlu0 %1453
    %1457 = vset.pattern.permute.xlu0 0
    %1458 = vperm.xlu0 %1457, %v1368
    %v1459 = vpop.permute.xlu0 %1458
    %1462 = vset.pattern.permute.xlu0 0
    %1463 = vperm.xlu0 %1462, %v1369
    %v1464 = vpop.permute.xlu0 %1463
    %1467 = vset.pattern.permute.xlu0 0
    %1468 = vperm.xlu0 %1467, %v1370
    %v1469 = vpop.permute.xlu0 %1468
    %1472 = vset.pattern.permute.xlu0 0
    %1473 = vperm.xlu0 %1472, %v1371
    %v1474 = vpop.permute.xlu0 %1473
    %1477 = vset.pattern.permute.xlu0 0
    %1478 = vperm.xlu0 %1477, %v1372
    %v1479 = vpop.permute.xlu0 %1478
    %1482 = vset.pattern.permute.xlu0 0
    %1483 = vperm.xlu0 %1482, %v1373
    %v1484 = vpop.permute.xlu0 %1483
    %1487 = vset.pattern.permute.xlu0 0
    %1488 = vperm.xlu0 %1487, %v1374
    %v1489 = vpop.permute.xlu0 %1488
    %1492 = vset.pattern.permute.xlu0 0
    %1493 = vperm.xlu0 %1492, %v1375
    %v1494 = vpop.permute.xlu0 %1493
    %1497 = vset.pattern.permute.xlu0 0
    %1498 = vperm.xlu0 %1497, %v1376
    %v1499 = vpop.permute.xlu0 %1498
    %1502 = vset.pattern.permute.xlu0 0
    %1503 = vperm.xlu0 %1502, %v1377
    %v1504 = vpop.permute.xlu0 %1503
    %1507 = vset.pattern.permute.xlu0 0
    %1508 = vperm.xlu0 %1507, %v1378
    %v1509 = vpop.permute.xlu0 %1508
    %1512 = vset.pattern.permute.xlu0 0
    %1513 = vperm.xlu0 %1512, %v1379
    %v1514 = vpop.permute.xlu0 %1513
    %1517 = vset.pattern.permute.xlu0 0
    %1518 = vperm.xlu0 %1517, %v1380
    %v1519 = vpop.permute.xlu0 %1518
    %1522 = vset.pattern.permute.xlu0 0
    %1523 = vperm.xlu0 %1522, %v1381
    %v1524 = vpop.permute.xlu0 %1523
    %1527 = vset.pattern.permute.xlu0 0
    %1528 = vperm.xlu0 %1527, %v1382
    %v1529 = vpop.permute.xlu0 %1528
    %1532 = vset.pattern.permute.xlu0 0
    %1533 = vperm.xlu0 %1532, %v1383
    %v1534 = vpop.permute.xlu0 %1533
    %1537 = vset.pattern.permute.xlu0 0
    %1538 = vperm.xlu0 %1537, %v1384
    %v1539 = vpop.permute.xlu0 %1538
    %1542 = vset.pattern.permute.xlu0 0
    %1543 = vperm.xlu0 %1542, %v1385
    %v1544 = vpop.permute.xlu0 %1543
    %1547 = vset.pattern.permute.xlu0 0
    %1548 = vperm.xlu0 %1547, %v1386
    %v1549 = vpop.permute.xlu0 %1548
    %1552 = vset.pattern.permute.xlu0 0
    %1553 = vperm.xlu0 %1552, %v1387
    %v1554 = vpop.permute.xlu0 %1553
    %1557 = vset.pattern.permute.xlu0 0
    %1558 = vperm.xlu0 %1557, %v1388
    %v1559 = vpop.permute.xlu0 %1558
    %1562 = vset.pattern.permute.xlu0 0
    %1563 = vperm.xlu0 %1562, %v1389
    %v1564 = vpop.permute.xlu0 %1563
    %1567 = vset.pattern.permute.xlu0 0
    %1568 = vperm.xlu0 %1567, %v1390
    %v1569 = vpop.permute.xlu0 %1568
    %1572 = vset.pattern.permute.xlu0 0
    %1573 = vperm.xlu0 %1572, %v1391
    %v1574 = vpop.permute.xlu0 %1573
    %1577 = vset.pattern.permute.xlu0 0
    %1578 = vperm.xlu0 %1577, %v1392
    %v1579 = vpop.permute.xlu0 %1578
    %1582 = vset.pattern.permute.xlu0 0
    %1583 = vperm.xlu0 %1582, %v1393
    %v1584 = vpop.permute.xlu0 %1583
    %v1586 = vmul.f32 %v1429, %v1394
    %v1587 = vmul.f32 %v1434, %v1395
    %v1588 = vmul.f32 %v1439, %v1396
    %v1589 = vmul.f32 %v1444, %v1397
    %v1590 = vmul.f32 %v1449, %v1398
    %v1591 = vmul.f32 %v1454, %v1399
    %v1592 = vmul.f32 %v1459, %v1400
    %v1593 = vmul.f32 %v1464, %v1401
    %v1594 = vmul.f32 %v1469, %v1402
    %v1595 = vmul.f32 %v1474, %v1403
    %v1596 = vmul.f32 %v1479, %v1404
    %v1597 = vmul.f32 %v1484, %v1405
    %v1598 = vmul.f32 %v1489, %v1406
    %v1599 = vmul.f32 %v1494, %v1407
    %v1600 = vmul.f32 %v1499, %v1408
    %v1601 = vmul.f32 %v1504, %v1409
    %v1602 = vmul.f32 %v1509, %v1410
    %v1603 = vmul.f32 %v1514, %v1411
    %v1604 = vmul.f32 %v1519, %v1412
    %v1605 = vmul.f32 %v1524, %v1413
    %v1606 = vmul.f32 %v1529, %v1414
    %v1607 = vmul.f32 %v1534, %v1415
    %v1608 = vmul.f32 %v1539, %v1416
    %v1609 = vmul.f32 %v1544, %v1417
    %v1610 = vmul.f32 %v1549, %v1418
    %v1611 = vmul.f32 %v1554, %v1419
    %v1612 = vmul.f32 %v1559, %v1420
    %v1613 = vmul.f32 %v1564, %v1421
    %v1614 = vmul.f32 %v1569, %v1422
    %v1615 = vmul.f32 %v1574, %v1423
    %v1616 = vmul.f32 %v1579, %v1424
    %v1617 = vmul.f32 %v1584, %v1425
    %v1618 = vadd.f32 %v1586, %v1587
    %v1619 = vrot.slane %v1618, 4
    %v1620 = vadd.f32 %v1618, %v1619
    %v1621 = vrot.slane %v1620, 2
    %v1622 = vadd.f32 %v1620, %v1621
    %v1623 = vrot.slane %v1622, 1
    %v1624 = vadd.f32 %v1622, %v1623
    %v1625 = vadd.f32 %v1588, %v1589
    %v1626 = vrot.slane %v1625, 4
    %v1627 = vadd.f32 %v1625, %v1626
    %v1628 = vrot.slane %v1627, 2
    %v1629 = vadd.f32 %v1627, %v1628
    %v1630 = vrot.slane %v1629, 1
    %v1631 = vadd.f32 %v1629, %v1630
    %v1632 = vadd.f32 %v1590, %v1591
    %v1633 = vrot.slane %v1632, 4
    %v1634 = vadd.f32 %v1632, %v1633
    %v1635 = vrot.slane %v1634, 2
    %v1636 = vadd.f32 %v1634, %v1635
    %v1637 = vrot.slane %v1636, 1
    %v1638 = vadd.f32 %v1636, %v1637
    %v1639 = vadd.f32 %v1592, %v1593
    %v1640 = vrot.slane %v1639, 4
    %v1641 = vadd.f32 %v1639, %v1640
    %v1642 = vrot.slane %v1641, 2
    %v1643 = vadd.f32 %v1641, %v1642
    %v1644 = vrot.slane %v1643, 1
    %v1645 = vadd.f32 %v1643, %v1644
    %v1646 = vadd.f32 %v1594, %v1595
    %v1647 = vrot.slane %v1646, 4
    %v1648 = vadd.f32 %v1646, %v1647
    %v1649 = vrot.slane %v1648, 2
    %v1650 = vadd.f32 %v1648, %v1649
    %v1651 = vrot.slane %v1650, 1
    %v1652 = vadd.f32 %v1650, %v1651
    %v1653 = vadd.f32 %v1596, %v1597
    %v1654 = vrot.slane %v1653, 4
    %v1655 = vadd.f32 %v1653, %v1654
    %v1656 = vrot.slane %v1655, 2
    %v1657 = vadd.f32 %v1655, %v1656
    %v1658 = vrot.slane %v1657, 1
    %v1659 = vadd.f32 %v1657, %v1658
    %v1660 = vadd.f32 %v1598, %v1599
    %v1661 = vrot.slane %v1660, 4
    %v1662 = vadd.f32 %v1660, %v1661
    %v1663 = vrot.slane %v1662, 2
    %v1664 = vadd.f32 %v1662, %v1663
    %v1665 = vrot.slane %v1664, 1
    %v1666 = vadd.f32 %v1664, %v1665
    %v1667 = vadd.f32 %v1600, %v1601
    %v1668 = vrot.slane %v1667, 4
    %v1669 = vadd.f32 %v1667, %v1668
    %v1670 = vrot.slane %v1669, 2
    %v1671 = vadd.f32 %v1669, %v1670
    %v1672 = vrot.slane %v1671, 1
    %v1673 = vadd.f32 %v1671, %v1672
    %v1674 = vadd.f32 %v1602, %v1603
    %v1675 = vrot.slane %v1674, 4
    %v1676 = vadd.f32 %v1674, %v1675
    %v1677 = vrot.slane %v1676, 2
    %v1678 = vadd.f32 %v1676, %v1677
    %v1679 = vrot.slane %v1678, 1
    %v1680 = vadd.f32 %v1678, %v1679
    %v1681 = vadd.f32 %v1604, %v1605
    %v1682 = vrot.slane %v1681, 4
    %v1683 = vadd.f32 %v1681, %v1682
    %v1684 = vrot.slane %v1683, 2
    %v1685 = vadd.f32 %v1683, %v1684
    %v1686 = vrot.slane %v1685, 1
    %v1687 = vadd.f32 %v1685, %v1686
    %v1688 = vadd.f32 %v1606, %v1607
    %v1689 = vrot.slane %v1688, 4
    %v1690 = vadd.f32 %v1688, %v1689
    %v1691 = vrot.slane %v1690, 2
    %v1692 = vadd.f32 %v1690, %v1691
    %v1693 = vrot.slane %v1692, 1
    %v1694 = vadd.f32 %v1692, %v1693
    %v1695 = vadd.f32 %v1608, %v1609
    %v1696 = vrot.slane %v1695, 4
    %v1697 = vadd.f32 %v1695, %v1696
    %v1698 = vrot.slane %v1697, 2
    %v1699 = vadd.f32 %v1697, %v1698
    %v1700 = vrot.slane %v1699, 1
    %v1701 = vadd.f32 %v1699, %v1700
    %v1702 = vadd.f32 %v1610, %v1611
    %v1703 = vrot.slane %v1702, 4
    %v1704 = vadd.f32 %v1702, %v1703
    %v1705 = vrot.slane %v1704, 2
    %v1706 = vadd.f32 %v1704, %v1705
    %v1707 = vrot.slane %v1706, 1
    %v1708 = vadd.f32 %v1706, %v1707
    %v1709 = vadd.f32 %v1612, %v1613
    %v1710 = vrot.slane %v1709, 4
    %v1711 = vadd.f32 %v1709, %v1710
    %v1712 = vrot.slane %v1711, 2
    %v1713 = vadd.f32 %v1711, %v1712
    %v1714 = vrot.slane %v1713, 1
    %v1715 = vadd.f32 %v1713, %v1714
    %v1716 = vadd.f32 %v1614, %v1615
    %v1717 = vrot.slane %v1716, 4
    %v1718 = vadd.f32 %v1716, %v1717
    %v1719 = vrot.slane %v1718, 2
    %v1720 = vadd.f32 %v1718, %v1719
    %v1721 = vrot.slane %v1720, 1
    %v1722 = vadd.f32 %v1720, %v1721
    %v1723 = vadd.f32 %v1616, %v1617
    %v1724 = vrot.slane %v1723, 4
    %v1725 = vadd.f32 %v1723, %v1724
    %v1726 = vrot.slane %v1725, 2
    %v1727 = vadd.f32 %v1725, %v1726
    %v1728 = vrot.slane %v1727, 1
    %v1729 = vadd.f32 %v1727, %v1728
    %v1746 = vsel %vm776, %v1631, %v1624
    %v1747 = vsel %vm778, %v1638, %v1746
    %v1748 = vsel %vm780, %v1645, %v1747
    %v1749 = vsel %vm782, %v1652, %v1748
    %v1750 = vsel %vm784, %v1659, %v1749
    %v1751 = vsel %vm786, %v1666, %v1750
    %v1752 = vsel %vm788, %v1673, %v1751
    %v1753 = vsel %vm776, %v1687, %v1680
    %v1754 = vsel %vm778, %v1694, %v1753
    %v1755 = vsel %vm780, %v1701, %v1754
    %v1756 = vsel %vm782, %v1708, %v1755
    %v1757 = vsel %vm784, %v1715, %v1756
    %v1758 = vsel %vm786, %v1722, %v1757
    %v1759 = vsel %vm788, %v1729, %v1758
    %1762 = vst [vmem:[#allocation11] sm:$0xff] %v1752
    %1763 = vst [vmem:[#allocation11 + $0x8] sm:$0xff] %v1759
    // Predicated region
    $region46: #{tpu_custom_call.1} parent=1 // pred_check
      _
    $region47: #{tpu_custom_call.1} parent=1 // pred_check_branch
      %1765 = sbr.rel (0) target = $region49
    $region48: #{tpu_custom_call.1} parent=1 // pred_region
      %s1767 = ssub.s32 256, 256
      %1768 = vsyncadd [#allocation5], %s1767
      %s1769 = sshll.u32 [#allocation11], 4
      %s1770 = int_to_ptr.vmem [resolvable:$true] %s1769
      %1775 = dma.vmem_to_hbm [thread:$0]  %s1770, 256, %s7, [#allocation5], 128, 128, 8
    $region49: #{tpu_custom_call.1} parent=1 // pred_fallthru
      _
    // Predicated region
    $region50: #{tpu_custom_call.1} parent=1 // pred_check
      _
    $region51: #{tpu_custom_call.1} parent=1 // pred_check_branch
      %1777 = sbr.rel (0) target = $region53
    $region52: #{tpu_custom_call.1} parent=1 // pred_region
      %1778 = dma.done [#allocation5], 256
    $region53: #{tpu_custom_call.1} parent=1 // pred_fallthru
      _
    %1779 = vsyncpa [#allocation4], 1
    %1780 = vsyncpa [#allocation7], 1
    %1781 = vsyncpa [#allocation10], 1
    %1782 = vsyncpa [#allocation5], 1

</llo_original>
